<compile_context>
chip_gen: v6e
topology: v6e:2x2x1
jax: 0.10.0
libtpu: 0.0.40
codegen_flags: <defaults>
</compile_context>

<pallas_src>
import functools
import math

import jax
import jax.numpy as jnp
from jax import lax
from jax.experimental import pallas as pl
from jax.experimental.pallas import tpu as pltpu


# Optional: single-buffer the grid-invariant operands (weights / pos-embed);
# their index_maps never change so double-buffering them is pure VMEM waste.
# Off by default because pipeline_mode=pl.Buffered(1) on top-level pallas_call
# BlockSpecs is not guaranteed to lower on every installed jax build.
# TODO(synk): flip to True once pl.Buffered(1) lowering is verified on target.
SINGLE_BUFFER_WEIGHTS = False


def _round_up(n, m):
    return ((n + m - 1) // m) * m


def _vmem_capacity_bytes():
    try:
        return int(pltpu.get_tpu_info().vmem_capacity_bytes)
    except Exception:
        return 64 << 20          # conservative (v7x-sized) fallback


def _const_block_spec(shape, index_map):
    if SINGLE_BUFFER_WEIGHTS:
        return pl.BlockSpec(shape, index_map, pipeline_mode=pl.Buffered(1))
    return pl.BlockSpec(shape, index_map)


def _vmem_estimate(s_pad, dp, dffp, npack, tq, emit_attn):
    bf, f32 = 2, 4
    weights = (4 * dp * dp + 2 * dp * dffp) * bf + 8 * npack * f32
    inputs = 2 * s_pad * dp * bf                       # x + pos blocks (bf16)
    outputs = tq * dp * f32 + (tq * s_pad * bf if emit_attn else 0)
    scratch = 2 * s_pad * dp * bf                      # K/V bf16 scratch
    temps = (s_pad * dp * (f32 + bf)                   # one-shot h_kv at qi==0
             + 4 * tq * s_pad * f32                    # scores / exp / attn
             + 2 * tq * dffp * f32                     # FFN hidden
             + 8 * tq * dp * f32)                      # q / ctx / residual / LN
    return 2 * (weights + inputs + outputs) + scratch + temps


# ----------------------------------------------------------------------------
# Kernel factory: one encoder layer; grid point = (batch element, query tile).
# ----------------------------------------------------------------------------
def _make_encoder_layer_kernel(*, d_true, s_true, s_pad, d_pad, dff_pad, tq,
                               emit_attn):
    eps = 1e-5
    scale = 1.0 / math.sqrt(d_true)      # single-head scale (1/sqrt(d_model))
    inv_d = 1.0 / float(d_true)

    def kernel(x_ref, p_ref, wq_ref, wk_ref, wv_ref, wo_ref,
               w1_ref, w2_ref, vec_ref, *rest):
        if emit_attn:
            out_ref, attn_ref, k_scr, v_scr = rest
        else:
            (out_ref, k_scr, v_scr), attn_ref = rest, None

        qi = pl.program_id(1)

        # ---- K/V projection: ONCE per batch element (first query tile) ----
        # x/p block indices don't depend on qi, so their DMA is also reissued
        # only when the batch index changes.
        @pl.when(qi == 0)
        def _():
            h_kv = (x_ref[...].astype(jnp.float32)
                    + p_ref[...].astype(jnp.float32)).astype(jnp.bfloat16)
            k_scr[...] = jnp.dot(h_kv, wk_ref[...],
                                 preferred_element_type=jnp.float32
                                 ).astype(jnp.bfloat16)
            v_scr[...] = jnp.dot(h_kv, wv_ref[...],
                                 preferred_element_type=jnp.float32
                                 ).astype(jnp.bfloat16)

        # Per-tile query path (cheap: only tq rows).
        q0 = pl.multiple_of(qi * tq, tq)
        h_q = (x_ref[pl.ds(q0, tq), :].astype(jnp.float32)
               + p_ref[pl.ds(q0, tq), :].astype(jnp.float32))

        q = jnp.dot(h_q.astype(jnp.bfloat16), wq_ref[...],
                    preferred_element_type=jnp.float32)             # [tq, Dp]

        # NT contraction over the feature dim (same form as the official
        # Pallas TPU flash-attention kernel; no explicit k transpose copy).
        scores = lax.dot_general(
            q.astype(jnp.bfloat16), k_scr[...],
            (((1,), (1,)), ((), ())),
            preferred_element_type=jnp.float32) * scale             # [tq, Sp]

        if s_pad != s_true:
            key_ids = lax.broadcasted_iota(jnp.int32, (tq, s_pad), 1)
            scores = jnp.where(key_ids < s_true, scores, -1e30)

        m = jnp.max(scores, axis=-1, keepdims=True)
        e = jnp.exp(scores - m)
        attn = e * pl.reciprocal(jnp.sum(e, axis=-1, keepdims=True),
                                 approx=True)

        if emit_attn:
            attn_ref[...] = attn.astype(attn_ref.dtype)             # bf16

        ctx = jnp.dot(attn.astype(jnp.bfloat16), v_scr[...],
                      preferred_element_type=jnp.float32)           # [tq, Dp]
        attn_out = jnp.dot(ctx.astype(jnp.bfloat16), wo_ref[...],
                           preferred_element_type=jnp.float32)      # [tq, Dp]

        # Packed small vectors: rows 0=b1, 1=b2, 2=g1, 3=be1, 4=g2, 5=be2.
        vecs = vec_ref[...]
        b1 = vecs[0:1, :dff_pad]
        b2 = vecs[1:2, :d_pad]
        g1 = vecs[2:3, :d_pad]
        be1 = vecs[3:4, :d_pad]
        g2 = vecs[4:5, :d_pad]
        be2 = vecs[5:6, :d_pad]

        if d_pad != d_true:
            col_mask = (lax.broadcasted_iota(jnp.int32, (1, d_pad), 1)
                        < d_true).astype(jnp.float32)
        else:
            col_mask = None

        def layer_norm(h, g, be):
            # Stats over the true feature width only; padded columns of h are
            # exactly zero by construction.
            mu = jnp.sum(h, axis=-1, keepdims=True) * inv_d
            diff = h - mu
            if col_mask is not None:
                diff = diff * col_mask
            var = jnp.sum(diff * diff, axis=-1, keepdims=True) * inv_d
            return diff * lax.rsqrt(var + eps) * g + be

        # --- residual + LayerNorm 1 ---
        h1n = layer_norm(h_q + attn_out, g1, be1)

        # --- position-wise FFN (ReLU) ---
        f = jnp.dot(h1n.astype(jnp.bfloat16), w1_ref[...],
                    preferred_element_type=jnp.float32) + b1
        f = jnp.maximum(f, 0.0)
        f = jnp.dot(f.astype(jnp.bfloat16), w2_ref[...],
                    preferred_element_type=jnp.float32) + b2

        # --- residual + LayerNorm 2 ---
        out_ref[...] = layer_norm(h1n + f, g2, be2).astype(out_ref.dtype)

    return kernel


# ----------------------------------------------------------------------------
# Wrapper: one encoder layer over a D-padded bf16 [B, S, dp] slice.
# ----------------------------------------------------------------------------
def encoder_layer(x_pD, p_pD, params, *, tq_max=256, return_attn=False,
                  out_dtype=jnp.float32):
    """x_pD: (B, S, dp) bf16 (feature dim zero-padded to dp); p_pD: (1, S, dp).

    Returns (out, attn): out (B, S, dp) in out_dtype (padded feature columns
    are exactly zero); attn (B, S, S) bf16 or None.
    """
    B, S, dp = x_pD.shape
    D = params["d_model"]
    dffp = params["w1"].shape[1]
    npack = params["vec"].shape[1]
    assert dp == params["wq"].shape[0]

    # Generation-aware VMEM budget (~96 MiB on v5e/v6e, 48 MiB on v7x).
    clamp = min((_vmem_capacity_bytes() * 3) // 4, 100 << 20)

    # Tile selection: never shrink tq to divide S; pad S up to a multiple of
    # tq.  Halve tq only if the VMEM estimate exceeds the budget (v7x).
    tq = min(_round_up(max(tq_max, 8), 8), _round_up(S, 8))
    while True:
        s_pad = _round_up(S, tq)
        est = _vmem_estimate(s_pad, dp, dffp, npack, tq, return_attn)
        if est <= clamp or tq <= 8:
            break
        new_tq = max(8, ((tq // 2) // 8) * 8)
        if new_tq == tq:
            break
        tq = new_tq
    n_qt = s_pad // tq
    vmem_limit = int(min(max(est * 5 // 4, 32 << 20), clamp))

    if s_pad != S:
        xp = jnp.pad(x_pD, ((0, 0), (0, s_pad - S), (0, 0)))
        pp = jnp.pad(p_pD, ((0, 0), (0, s_pad - S), (0, 0)))
    else:
        xp, pp = x_pD, p_pD

    kernel = _make_encoder_layer_kernel(
        d_true=D, s_true=S, s_pad=s_pad, d_pad=dp, dff_pad=dffp, tq=tq,
        emit_attn=return_attn)

    in_specs = [
        pl.BlockSpec((None, s_pad, dp), lambda b, qi: (b, 0, 0)),      # x
        _const_block_spec((None, s_pad, dp), lambda b, qi: (0, 0, 0)), # pos
        _const_block_spec((dp, dp), lambda b, qi: (0, 0)),             # wq
        _const_block_spec((dp, dp), lambda b, qi: (0, 0)),             # wk
        _const_block_spec((dp, dp), lambda b, qi: (0, 0)),             # wv
        _const_block_spec((dp, dp), lambda b, qi: (0, 0)),             # wo
        _const_block_spec((dp, dffp), lambda b, qi: (0, 0)),           # w1
        _const_block_spec((dffp, dp), lambda b, qi: (0, 0)),           # w2
        _const_block_spec((8, npack), lambda b, qi: (0, 0)),           # vecs
    ]

    out_spec = pl.BlockSpec((None, tq, dp), lambda b, qi: (b, qi, 0))
    out_shape = jax.ShapeDtypeStruct((B, s_pad, dp), out_dtype)
    if return_attn:
        out_specs = (out_spec,
                     pl.BlockSpec((None, tq, s_pad), lambda b, qi: (b, qi, 0)))
        out_shapes = (out_shape,
                      jax.ShapeDtypeStruct((B, s_pad, s_pad), jnp.bfloat16))
    else:
        out_specs = out_spec
        out_shapes = out_shape

    call = pl.pallas_call(
        kernel,
        grid=(B, n_qt),
        in_specs=in_specs,
        out_specs=out_specs,
        out_shape=out_shapes,
        scratch_shapes=[pltpu.VMEM((s_pad, dp), jnp.bfloat16),   # K (bf16)
                        pltpu.VMEM((s_pad, dp), jnp.bfloat16)],  # V (bf16)
        compiler_params=pltpu.CompilerParams(
            # qi is "arbitrary": K/V scratch is written at qi==0 and reused.
            dimension_semantics=("parallel", "arbitrary"),
            vmem_limit_bytes=vmem_limit,
        ),
    )
    args = (xp, pp,
            params["wq"], params["wk"], params["wv"], params["wo"],
            params["w1"], params["w2"], params["vec"])

    if return_attn:
        out_p, attn_p = call(*args)
        return out_p[:, :S, :], attn_p[:, :S, :S]
    return call(*args)[:, :S, :], None


# ----------------------------------------------------------------------------
# EncoderStack.forward equivalent.
# ----------------------------------------------------------------------------
def encoder_stack_forward(x, pos_embed, params_list, inp_lens, attn_mask=None,
                          *, tq_max=256, return_attn=True):
    # return_attn=True matches the PyTorch reference (it returns attns); set
    # False to drop the largest HBM write when the weights aren't needed.
    if attn_mask is not None:
        raise NotImplementedError("attn_mask is not supported")  # TODO(synk)

    B, L, D = x.shape
    dp = params_list[0]["wq"].shape[0]
    # Pad the feature dim and cast to bf16 ONCE for the whole stack; the
    # kernel upcasts to f32 for the elementwise / LayerNorm math.
    xp = jnp.pad(x, ((0, 0), (0, 0), (0, dp - D))).astype(jnp.bfloat16)
    pp = jnp.pad(pos_embed, ((0, 0), (0, 0), (0, dp - D))).astype(jnp.bfloat16)

    outs, attns = [], []
    for i_len, params in zip(inp_lens, params_list):
        inp_len = L // (2 ** i_len)
        out, attn = encoder_layer(xp[:, -inp_len:, :], pp[:, -inp_len:, :],
                                  params, tq_max=tq_max,
                                  return_attn=return_attn,
                                  out_dtype=jnp.float32)
        outs.append(out)
        attns.append(attn)
    # Outputs stay D-padded through the concat; slice the pad off once.
    x_stack = jnp.concatenate(outs, axis=1)[:, :, :D].astype(x.dtype)
    return x_stack, attns


# ----------------------------------------------------------------------------
# Parameter construction: raw f32 params -> padded, bf16-weight, packed form.
# ----------------------------------------------------------------------------
def prepare_encoder_params(raw, D, Dff):
    dp = _round_up(D, 128)
    dffp = _round_up(Dff, 128)
    npack = max(dp, dffp)
    pad2 = lambda a, r, c: jnp.pad(a, ((0, r - a.shape[0]), (0, c - a.shape[1])))

    vec = jnp.zeros((8, npack), jnp.float32)
    vec = vec.at[0, :Dff].set(raw["b1"].reshape(-1))
    vec = vec.at[1, :D].set(raw["b2"].reshape(-1))
    vec = vec.at[2, :D].set(raw["g1"].reshape(-1))
    vec = vec.at[3, :D].set(raw["be1"].reshape(-1))
    vec = vec.at[4, :D].set(raw["g2"].reshape(-1))
    vec = vec.at[5, :D].set(raw["be2"].reshape(-1))

    return {
        "wq": pad2(raw["wq"], dp, dp).astype(jnp.bfloat16),
        "wk": pad2(raw["wk"], dp, dp).astype(jnp.bfloat16),
        "wv": pad2(raw["wv"], dp, dp).astype(jnp.bfloat16),
        "wo": pad2(raw["wo"], dp, dp).astype(jnp.bfloat16),
        "w1": pad2(raw["w1"], dp, dffp).astype(jnp.bfloat16),
        "w2": pad2(raw["w2"], dffp, dp).astype(jnp.bfloat16),
        "vec": vec,
        "d_model": D,
        "d_ff": Dff,
    }


def make_encoder_params(key, D, Dff):
    ks = jax.random.split(key, 6)
    s_d = 1.0 / math.sqrt(D)
    s_f = 1.0 / math.sqrt(Dff)
    raw = {
        "wq": jax.random.normal(ks[0], (D, D), jnp.float32) * s_d,
        "wk": jax.random.normal(ks[1], (D, D), jnp.float32) * s_d,
        "wv": jax.random.normal(ks[2], (D, D), jnp.float32) * s_d,
        "wo": jax.random.normal(ks[3], (D, D), jnp.float32) * s_d,
        "w1": jax.random.normal(ks[4], (D, Dff), jnp.float32) * s_d,
        "b1": jnp.zeros((1, Dff), jnp.float32),
        "w2": jax.random.normal(ks[5], (Dff, D), jnp.float32) * s_f,
        "b2": jnp.zeros((1, D), jnp.float32),
        "g1": jnp.ones((1, D), jnp.float32),
        "be1": jnp.zeros((1, D), jnp.float32),
        "g2": jnp.ones((1, D), jnp.float32),
        "be2": jnp.zeros((1, D), jnp.float32),
    }
    return prepare_encoder_params(raw, D, Dff)


# ----------------------------------------------------------------------------
# Pure-JAX reference (mirrors the kernel's bf16 rounding points) for checking.
# ----------------------------------------------------------------------------
def _encoder_layer_reference(x_s, p_s, params):
    D, Dff = params["d_model"], params["d_ff"]
    f32, bf = jnp.float32, jnp.bfloat16
    wq = params["wq"][:D, :D]
    wk = params["wk"][:D, :D]
    wv = params["wv"][:D, :D]
    wo = params["wo"][:D, :D]
    w1 = params["w1"][:D, :Dff]
    w2 = params["w2"][:Dff, :D]
    vec = params["vec"]
    b1, b2 = vec[0, :Dff], vec[1, :D]
    g1, be1, g2, be2 = vec[2, :D], vec[3, :D], vec[4, :D], vec[5, :D]

    mm = functools.partial(jnp.einsum, preferred_element_type=f32)

    h = x_s.astype(bf).astype(f32) + p_s.astype(bf).astype(f32)
    hb = h.astype(bf)
    q = mm("bsd,de->bse", hb, wq)
    k = mm("bsd,de->bse", hb, wk).astype(bf)
    v = mm("bsd,de->bse", hb, wv).astype(bf)
    scores = mm("bqd,bkd->bqk", q.astype(bf), k) / math.sqrt(D)
    attn = jax.nn.softmax(scores, axis=-1)
    ctx = mm("bqk,bkd->bqd", attn.astype(bf), v)
    attn_out = mm("bsd,de->bse", ctx.astype(bf), wo)

    def ln(h, g, be):
        mu = jnp.mean(h, axis=-1, keepdims=True)
        var = jnp.mean((h - mu) ** 2, axis=-1, keepdims=True)
        return (h - mu) * lax.rsqrt(var + 1e-5) * g + be

    h1n = ln(h + attn_out, g1, be1)
    f = jnp.maximum(mm("bsd,df->bsf", h1n.astype(bf), w1) + b1, 0.0)
    f = mm("bsf,fd->bsd", f.astype(bf), w2) + b2
    return ln(h1n + f, g2, be2), attn


if __name__ == "__main__":
    B, L, D, Dff = 2, 16, 32, 64
    inp_lens = [0, 1, 2]                  # suffix lengths: 16, 8, 4

    key = jax.random.PRNGKey(0)
    kx, kp, kw = jax.random.split(key, 3)
    x = jax.random.normal(kx, (B, L, D), jnp.float32)
    pos_embed = jax.random.normal(kp, (1, L, D), jnp.float32)

    params_list = [make_encoder_params(k, D, Dff)
                   for k in jax.random.split(kw, len(inp_lens))]

    # Default path: attention weights returned (parity with the reference).
    x_stack, attns = encoder_stack_forward(x, pos_embed, params_list, inp_lens,
                                           return_attn=True)
    x_stack = jax.block_until_ready(x_stack)
    attns = [jax.block_until_ready(a) for a in attns]

    lens = [L // 2 ** i for i in inp_lens]
    assert x_stack.shape == (B, sum(lens), D)
    assert [a.shape for a in attns] == [(B, n, n) for n in lens]

    # Pure-JAX reference (mirrors the kernel's precision choices).
    ref_outs, ref_attns = [], []
    for i_len, params in zip(inp_lens, params_list):
        n = L // 2 ** i_len
        o, a = _encoder_layer_reference(x[:, -n:, :], pos_embed[:, -n:, :],
                                        params)
        ref_outs.append(o)
        ref_attns.append(a)
    ref_stack = jnp.concatenate(ref_outs, axis=1)

    assert bool(jnp.all(jnp.isfinite(x_stack)))
    assert bool(jnp.allclose(x_stack, ref_stack, atol=1e-1, rtol=1e-1))
    for a, ra in zip(attns, ref_attns):
        af = a.astype(jnp.float32)
        assert bool(jnp.all(jnp.isfinite(af)))
        assert bool(jnp.allclose(af, ra, atol=5e-2, rtol=5e-2))

    # Second run with tiny tiles and no attn output: exercises the multi-tile
    # grid (qi>0 reads the K/V scratch written at qi==0) and the single-output
    # spec variant.
    x_stack2, _ = encoder_stack_forward(x, pos_embed, params_list, inp_lens,
                                        tq_max=8, return_attn=False)
    x_stack2 = jax.block_until_ready(x_stack2)
    assert bool(jnp.allclose(x_stack2, ref_stack, atol=1e-1, rtol=1e-1))

    print("KERNEL_OK")
</pallas_src>

<mosaic_0001>
module attributes {stable_mosaic.version = 11 : i64} {
  func.func @kernel(%arg0: i32, %arg1: i32, %arg2: memref<1x16x128xbf16, #tpu.memory_space<vmem>>, %arg3: memref<1x16x128xbf16, #tpu.memory_space<vmem>>, %arg4: memref<128x128xbf16, #tpu.memory_space<vmem>>, %arg5: memref<128x128xbf16, #tpu.memory_space<vmem>>, %arg6: memref<128x128xbf16, #tpu.memory_space<vmem>>, %arg7: memref<128x128xbf16, #tpu.memory_space<vmem>>, %arg8: memref<128x128xbf16, #tpu.memory_space<vmem>>, %arg9: memref<128x128xbf16, #tpu.memory_space<vmem>>, %arg10: memref<8x128xf32, #tpu.memory_space<vmem>>, %arg11: memref<1x16x128xf32, #tpu.memory_space<vmem>>, %arg12: memref<1x16x16xbf16, #tpu.memory_space<vmem>>, %arg13: memref<16x128xbf16, #tpu.memory_space<vmem>>, %arg14: memref<16x128xbf16, #tpu.memory_space<vmem>>) attributes {dimension_semantics = [#tpu.dimension_semantics<parallel>, #tpu.dimension_semantics<arbitrary>], iteration_bounds = array<i64: 2, 1>, scalar_prefetch = 0 : i64, scratch_operands = 2 : i64, tpu.core_type = #tpu.core_type<tc>, window_params = [{transform_indices = @transform_0, window_bounds = array<i64: 1, 16, 128>}, {pipeline_mode = #tpu.pipeline_mode<synchronous>, transform_indices = @transform_1, window_bounds = array<i64: 1, 16, 128>}, {pipeline_mode = #tpu.pipeline_mode<synchronous>, transform_indices = @transform_2, window_bounds = array<i64: 128, 128>}, {pipeline_mode = #tpu.pipeline_mode<synchronous>, transform_indices = @transform_3, window_bounds = array<i64: 128, 128>}, {pipeline_mode = #tpu.pipeline_mode<synchronous>, transform_indices = @transform_4, window_bounds = array<i64: 128, 128>}, {pipeline_mode = #tpu.pipeline_mode<synchronous>, transform_indices = @transform_5, window_bounds = array<i64: 128, 128>}, {pipeline_mode = #tpu.pipeline_mode<synchronous>, transform_indices = @transform_6, window_bounds = array<i64: 128, 128>}, {pipeline_mode = #tpu.pipeline_mode<synchronous>, transform_indices = @transform_7, window_bounds = array<i64: 128, 128>}, {pipeline_mode = #tpu.pipeline_mode<synchronous>, transform_indices = @transform_8, window_bounds = array<i64: 8, 128>}, {transform_indices = @transform_9, window_bounds = array<i64: 1, 16, 128>}, {transform_indices = @transform_10, window_bounds = array<i64: 1, 16, 16>}]} {
    %c0_i32 = arith.constant 0 : i32
    %0 = arith.cmpi eq, %arg1, %c0_i32 : i32
    %1 = arith.extui %0 : i1 to i32
    %c0_i32_0 = arith.constant 0 : i32
    %2 = arith.cmpi ne, %1, %c0_i32_0 : i32
    scf.if %2 {
      %c0_43 = arith.constant 0 : index
      %c0_44 = arith.constant 0 : index
      %c0_45 = arith.constant 0 : index
      %115 = vector.load %arg2[%c0_43, %c0_44, %c0_45] : memref<1x16x128xbf16, #tpu.memory_space<vmem>>, vector<1x16x128xbf16>
      %116 = vector.shape_cast %115 : vector<1x16x128xbf16> to vector<16x128xbf16>
      %117 = arith.extf %116 : vector<16x128xbf16> to vector<16x128xf32>
      %c0_46 = arith.constant 0 : index
      %c0_47 = arith.constant 0 : index
      %c0_48 = arith.constant 0 : index
      %118 = vector.load %arg3[%c0_46, %c0_47, %c0_48] : memref<1x16x128xbf16, #tpu.memory_space<vmem>>, vector<1x16x128xbf16>
      %119 = vector.shape_cast %118 : vector<1x16x128xbf16> to vector<16x128xbf16>
      %120 = arith.extf %119 : vector<16x128xbf16> to vector<16x128xf32>
      %121 = arith.addf %117, %120 : vector<16x128xf32>
      %122 = arith.truncf %121 : vector<16x128xf32> to vector<16x128xbf16>
      %c0_49 = arith.constant 0 : index
      %c0_50 = arith.constant 0 : index
      %123 = vector.load %arg5[%c0_49, %c0_50] : memref<128x128xbf16, #tpu.memory_space<vmem>>, vector<128x128xbf16>
      %cst_51 = arith.constant dense<0.000000e+00> : vector<16x128xf32>
      %124 = tpu.matmul %122, %123, %cst_51 {dimension_numbers = #tpu.dot_dimension_numbers<[1], [0], [0], [1], [0, 0, 1, 1], [], []>} : vector<16x128xbf16>, vector<128x128xbf16>, vector<16x128xf32> -> vector<16x128xf32>
      %125 = arith.truncf %124 : vector<16x128xf32> to vector<16x128xbf16>
      %c0_52 = arith.constant 0 : index
      %c0_53 = arith.constant 0 : index
      %126 = vector.load %arg13[%c0_52, %c0_53] : memref<16x128xbf16, #tpu.memory_space<vmem>>, vector<16x128xbf16>
      tpu.vector_store %arg13[%c0_52, %c0_53], %125 {strides = array<i32>} : memref<16x128xbf16, #tpu.memory_space<vmem>>, vector<16x128xbf16>,
      %c0_54 = arith.constant 0 : index
      %c0_55 = arith.constant 0 : index
      %127 = vector.load %arg6[%c0_54, %c0_55] : memref<128x128xbf16, #tpu.memory_space<vmem>>, vector<128x128xbf16>
      %cst_56 = arith.constant dense<0.000000e+00> : vector<16x128xf32>
      %128 = tpu.matmul %122, %127, %cst_56 {dimension_numbers = #tpu.dot_dimension_numbers<[1], [0], [0], [1], [0, 0, 1, 1], [], []>} : vector<16x128xbf16>, vector<128x128xbf16>, vector<16x128xf32> -> vector<16x128xf32>
      %129 = arith.truncf %128 : vector<16x128xf32> to vector<16x128xbf16>
      %c0_57 = arith.constant 0 : index
      %c0_58 = arith.constant 0 : index
      %130 = vector.load %arg14[%c0_57, %c0_58] : memref<16x128xbf16, #tpu.memory_space<vmem>>, vector<16x128xbf16>
      tpu.vector_store %arg14[%c0_57, %c0_58], %129 {strides = array<i32>} : memref<16x128xbf16, #tpu.memory_space<vmem>>, vector<16x128xbf16>,
    } else {
    }
    %c16_i32 = arith.constant 16 : i32
    %3 = arith.muli %arg1, %c16_i32 : i32
    %4 = tpu.assume_multiple %3, 16 : i32
    %c0 = arith.constant 0 : index
    %5 = arith.index_cast %4 : i32 to index
    %c0_1 = arith.constant 0 : index
    %6 = vector.load %arg2[%c0, %5, %c0_1] : memref<1x16x128xbf16, #tpu.memory_space<vmem>>, vector<1x16x128xbf16>
    %7 = vector.shape_cast %6 : vector<1x16x128xbf16> to vector<16x128xbf16>
    %8 = arith.extf %7 : vector<16x128xbf16> to vector<16x128xf32>
    %c0_2 = arith.constant 0 : index
    %9 = arith.index_cast %4 : i32 to index
    %c0_3 = arith.constant 0 : index
    %10 = vector.load %arg3[%c0_2, %9, %c0_3] : memref<1x16x128xbf16, #tpu.memory_space<vmem>>, vector<1x16x128xbf16>
    %11 = vector.shape_cast %10 : vector<1x16x128xbf16> to vector<16x128xbf16>
    %12 = arith.extf %11 : vector<16x128xbf16> to vector<16x128xf32>
    %13 = arith.addf %8, %12 : vector<16x128xf32>
    %14 = arith.truncf %13 : vector<16x128xf32> to vector<16x128xbf16>
    %c0_4 = arith.constant 0 : index
    %c0_5 = arith.constant 0 : index
    %15 = vector.load %arg4[%c0_4, %c0_5] : memref<128x128xbf16, #tpu.memory_space<vmem>>, vector<128x128xbf16>
    %cst = arith.constant dense<0.000000e+00> : vector<16x128xf32>
    %16 = tpu.matmul %14, %15, %cst {dimension_numbers = #tpu.dot_dimension_numbers<[1], [0], [0], [1], [0, 0, 1, 1], [], []>} : vector<16x128xbf16>, vector<128x128xbf16>, vector<16x128xf32> -> vector<16x128xf32>
    %17 = arith.truncf %16 : vector<16x128xf32> to vector<16x128xbf16>
    %c0_6 = arith.constant 0 : index
    %c0_7 = arith.constant 0 : index
    %18 = vector.load %arg13[%c0_6, %c0_7] : memref<16x128xbf16, #tpu.memory_space<vmem>>, vector<16x128xbf16>
    %cst_8 = arith.constant dense<0.000000e+00> : vector<16x16xf32>
    %19 = tpu.matmul %17, %18, %cst_8 {dimension_numbers = #tpu.dot_dimension_numbers<[1], [1], [0], [0], [0, 0, 1, 0], [], []>} : vector<16x128xbf16>, vector<16x128xbf16>, vector<16x16xf32> -> vector<16x16xf32>
    %cst_9 = arith.constant 0.176776692 : f32
    %20 = vector.broadcast %cst_9 : f32 to vector<16x16xf32>
    %21 = arith.mulf %19, %20 : vector<16x16xf32>
    %cst_10 = arith.constant dense<0xFF800000> : vector<16xf32>
    %22 = vector.multi_reduction <maximumf>, %21, %cst_10 [1] : vector<16x16xf32> to vector<16xf32>
    %23 = vector.shape_cast %22 : vector<16xf32> to vector<16x1xf32>
    %24 = vector.broadcast %23 : vector<16x1xf32> to vector<16x16xf32>
    %25 = arith.subf %21, %24 : vector<16x16xf32>
    %26 = math.exp %25 : vector<16x16xf32>
    %cst_11 = arith.constant dense<0.000000e+00> : vector<16xf32>
    %27 = vector.multi_reduction <add>, %26, %cst_11 [1] : vector<16x16xf32> to vector<16xf32>
    %28 = vector.shape_cast %27 : vector<16xf32> to vector<16x1xf32>
    %29 = tpu.reciprocal %28 {approx = true} : vector<16x1xf32> -> vector<16x1xf32>
    %30 = vector.broadcast %29 : vector<16x1xf32> to vector<16x16xf32>
    %31 = arith.mulf %26, %30 : vector<16x16xf32>
    %32 = arith.truncf %31 : vector<16x16xf32> to vector<16x16xbf16>
    %c0_12 = arith.constant 0 : index
    %c0_13 = arith.constant 0 : index
    %c0_14 = arith.constant 0 : index
    %33 = vector.load %arg12[%c0_12, %c0_13, %c0_14] : memref<1x16x16xbf16, #tpu.memory_space<vmem>>, vector<1x16x16xbf16>
    %34 = vector.shape_cast %33 : vector<1x16x16xbf16> to vector<16x16xbf16>
    %35 = vector.shape_cast %32 : vector<16x16xbf16> to vector<1x16x16xbf16>
    tpu.vector_store %arg12[%c0_12, %c0_13, %c0_14], %35 {strides = array<i32>} : memref<1x16x16xbf16, #tpu.memory_space<vmem>>, vector<1x16x16xbf16>,
    %36 = arith.truncf %31 : vector<16x16xf32> to vector<16x16xbf16>
    %c0_15 = arith.constant 0 : index
    %c0_16 = arith.constant 0 : index
    %37 = vector.load %arg14[%c0_15, %c0_16] : memref<16x128xbf16, #tpu.memory_space<vmem>>, vector<16x128xbf16>
    %cst_17 = arith.constant dense<0.000000e+00> : vector<16x128xf32>
    %38 = tpu.matmul %36, %37, %cst_17 {dimension_numbers = #tpu.dot_dimension_numbers<[1], [0], [0], [1], [0, 0, 1, 1], [], []>} : vector<16x16xbf16>, vector<16x128xbf16>, vector<16x128xf32> -> vector<16x128xf32>
    %39 = arith.truncf %38 : vector<16x128xf32> to vector<16x128xbf16>
    %c0_18 = arith.constant 0 : index
    %c0_19 = arith.constant 0 : index
    %40 = vector.load %arg7[%c0_18, %c0_19] : memref<128x128xbf16, #tpu.memory_space<vmem>>, vector<128x128xbf16>
    %cst_20 = arith.constant dense<0.000000e+00> : vector<16x128xf32>
    %41 = tpu.matmul %39, %40, %cst_20 {dimension_numbers = #tpu.dot_dimension_numbers<[1], [0], [0], [1], [0, 0, 1, 1], [], []>} : vector<16x128xbf16>, vector<128x128xbf16>, vector<16x128xf32> -> vector<16x128xf32>
    %c0_21 = arith.constant 0 : index
    %c0_22 = arith.constant 0 : index
    %42 = vector.load %arg10[%c0_21, %c0_22] : memref<8x128xf32, #tpu.memory_space<vmem>>, vector<8x128xf32>
    %43 = vector.extract_strided_slice %42 {offsets = [0, 0], sizes = [1, 128], strides = [1, 1]} : vector<8x128xf32> to vector<1x128xf32>
    %44 = vector.extract_strided_slice %42 {offsets = [1, 0], sizes = [1, 128], strides = [1, 1]} : vector<8x128xf32> to vector<1x128xf32>
    %45 = vector.extract_strided_slice %42 {offsets = [2, 0], sizes = [1, 128], strides = [1, 1]} : vector<8x128xf32> to vector<1x128xf32>
    %46 = vector.extract_strided_slice %42 {offsets = [3, 0], sizes = [1, 128], strides = [1, 1]} : vector<8x128xf32> to vector<1x128xf32>
    %47 = vector.extract_strided_slice %42 {offsets = [4, 0], sizes = [1, 128], strides = [1, 1]} : vector<8x128xf32> to vector<1x128xf32>
    %48 = vector.extract_strided_slice %42 {offsets = [5, 0], sizes = [1, 128], strides = [1, 1]} : vector<8x128xf32> to vector<1x128xf32>
    %49 = tpu.iota {dimensions = array<i32: 1>} : vector<1x128xi32>
    %c32_i32 = arith.constant 32 : i32
    %50 = vector.broadcast %c32_i32 : i32 to vector<1x128xi32>
    %51 = arith.cmpi slt, %49, %50 : vector<1x128xi32>
    %52 = arith.extui %51 : vector<1x128xi1> to vector<1x128xi32>
    %53 = arith.sitofp %52 : vector<1x128xi32> to vector<1x128xf32>
    %54 = arith.addf %13, %41 : vector<16x128xf32>
    %cst_23 = arith.constant dense<0.000000e+00> : vector<16xf32>
    %55 = vector.multi_reduction <add>, %54, %cst_23 [1] : vector<16x128xf32> to vector<16xf32>
    %56 = vector.shape_cast %55 : vector<16xf32> to vector<16x1xf32>
    %cst_24 = arith.constant 3.125000e-02 : f32
    %57 = vector.broadcast %cst_24 : f32 to vector<16x1xf32>
    %58 = arith.mulf %56, %57 : vector<16x1xf32>
    %59 = vector.broadcast %58 : vector<16x1xf32> to vector<16x128xf32>
    %60 = arith.subf %54, %59 : vector<16x128xf32>
    %61 = vector.broadcast %53 : vector<1x128xf32> to vector<16x128xf32>
    %62 = arith.mulf %60, %61 : vector<16x128xf32>
    %63 = arith.mulf %62, %62 : vector<16x128xf32>
    %cst_25 = arith.constant dense<0.000000e+00> : vector<16xf32>
    %64 = vector.multi_reduction <add>, %63, %cst_25 [1] : vector<16x128xf32> to vector<16xf32>
    %65 = vector.shape_cast %64 : vector<16xf32> to vector<16x1xf32>
    %cst_26 = arith.constant 3.125000e-02 : f32
    %66 = vector.broadcast %cst_26 : f32 to vector<16x1xf32>
    %67 = arith.mulf %65, %66 : vector<16x1xf32>
    %cst_27 = arith.constant 9.99999974E-6 : f32
    %68 = vector.broadcast %cst_27 : f32 to vector<16x1xf32>
    %69 = arith.addf %67, %68 : vector<16x1xf32>
    %70 = math.rsqrt %69 : vector<16x1xf32>
    %71 = vector.broadcast %70 : vector<16x1xf32> to vector<16x128xf32>
    %72 = arith.mulf %62, %71 : vector<16x128xf32>
    %73 = vector.broadcast %45 : vector<1x128xf32> to vector<16x128xf32>
    %74 = arith.mulf %72, %73 : vector<16x128xf32>
    %75 = vector.broadcast %46 : vector<1x128xf32> to vector<16x128xf32>
    %76 = arith.addf %74, %75 : vector<16x128xf32>
    %77 = arith.truncf %76 : vector<16x128xf32> to vector<16x128xbf16>
    %c0_28 = arith.constant 0 : index
    %c0_29 = arith.constant 0 : index
    %78 = vector.load %arg8[%c0_28, %c0_29] : memref<128x128xbf16, #tpu.memory_space<vmem>>, vector<128x128xbf16>
    %cst_30 = arith.constant dense<0.000000e+00> : vector<16x128xf32>
    %79 = tpu.matmul %77, %78, %cst_30 {dimension_numbers = #tpu.dot_dimension_numbers<[1], [0], [0], [1], [0, 0, 1, 1], [], []>} : vector<16x128xbf16>, vector<128x128xbf16>, vector<16x128xf32> -> vector<16x128xf32>
    %80 = vector.broadcast %43 : vector<1x128xf32> to vector<16x128xf32>
    %81 = arith.addf %79, %80 : vector<16x128xf32>
    %cst_31 = arith.constant 0.000000e+00 : f32
    %82 = vector.broadcast %cst_31 : f32 to vector<16x128xf32>
    %83 = arith.maximumf %81, %82 : vector<16x128xf32>
    %84 = arith.truncf %83 : vector<16x128xf32> to vector<16x128xbf16>
    %c0_32 = arith.constant 0 : index
    %c0_33 = arith.constant 0 : index
    %85 = vector.load %arg9[%c0_32, %c0_33] : memref<128x128xbf16, #tpu.memory_space<vmem>>, vector<128x128xbf16>
    %cst_34 = arith.constant dense<0.000000e+00> : vector<16x128xf32>
    %86 = tpu.matmul %84, %85, %cst_34 {dimension_numbers = #tpu.dot_dimension_numbers<[1], [0], [0], [1], [0, 0, 1, 1], [], []>} : vector<16x128xbf16>, vector<128x128xbf16>, vector<16x128xf32> -> vector<16x128xf32>
    %87 = vector.broadcast %44 : vector<1x128xf32> to vector<16x128xf32>
    %88 = arith.addf %86, %87 : vector<16x128xf32>
    %89 = arith.addf %76, %88 : vector<16x128xf32>
    %cst_35 = arith.constant dense<0.000000e+00> : vector<16xf32>
    %90 = vector.multi_reduction <add>, %89, %cst_35 [1] : vector<16x128xf32> to vector<16xf32>
    %91 = vector.shape_cast %90 : vector<16xf32> to vector<16x1xf32>
    %cst_36 = arith.constant 3.125000e-02 : f32
    %92 = vector.broadcast %cst_36 : f32 to vector<16x1xf32>
    %93 = arith.mulf %91, %92 : vector<16x1xf32>
    %94 = vector.broadcast %93 : vector<16x1xf32> to vector<16x128xf32>
    %95 = arith.subf %89, %94 : vector<16x128xf32>
    %96 = vector.broadcast %53 : vector<1x128xf32> to vector<16x128xf32>
    %97 = arith.mulf %95, %96 : vector<16x128xf32>
    %98 = arith.mulf %97, %97 : vector<16x128xf32>
    %cst_37 = arith.constant dense<0.000000e+00> : vector<16xf32>
    %99 = vector.multi_reduction <add>, %98, %cst_37 [1] : vector<16x128xf32> to vector<16xf32>
    %100 = vector.shape_cast %99 : vector<16xf32> to vector<16x1xf32>
    %cst_38 = arith.constant 3.125000e-02 : f32
    %101 = vector.broadcast %cst_38 : f32 to vector<16x1xf32>
    %102 = arith.mulf %100, %101 : vector<16x1xf32>
    %cst_39 = arith.constant 9.99999974E-6 : f32
    %103 = vector.broadcast %cst_39 : f32 to vector<16x1xf32>
    %104 = arith.addf %102, %103 : vector<16x1xf32>
    %105 = math.rsqrt %104 : vector<16x1xf32>
    %106 = vector.broadcast %105 : vector<16x1xf32> to vector<16x128xf32>
    %107 = arith.mulf %97, %106 : vector<16x128xf32>
    %108 = vector.broadcast %47 : vector<1x128xf32> to vector<16x128xf32>
    %109 = arith.mulf %107, %108 : vector<16x128xf32>
    %110 = vector.broadcast %48 : vector<1x128xf32> to vector<16x128xf32>
    %111 = arith.addf %109, %110 : vector<16x128xf32>
    %c0_40 = arith.constant 0 : index
    %c0_41 = arith.constant 0 : index
    %c0_42 = arith.constant 0 : index
    %112 = vector.load %arg11[%c0_40, %c0_41, %c0_42] : memref<1x16x128xf32, #tpu.memory_space<vmem>>, vector<1x16x128xf32>
    %113 = vector.shape_cast %112 : vector<1x16x128xf32> to vector<16x128xf32>
    %114 = vector.shape_cast %111 : vector<16x128xf32> to vector<1x16x128xf32>
    tpu.vector_store %arg11[%c0_40, %c0_41, %c0_42], %114 {strides = array<i32>} : memref<1x16x128xf32, #tpu.memory_space<vmem>>, vector<1x16x128xf32>,
    return
  }
  func.func @transform_0(%arg0: i32, %arg1: i32) -> (i32, i32, i32) {
    %c0_i32 = arith.constant 0 : i32
    %c0_i32_0 = arith.constant 0 : i32
    %c0_i32_1 = arith.constant 0 : i32
    return %arg0, %c0_i32, %c0_i32_0 : i32, i32, i32
  }
  func.func @transform_1(%arg0: i32, %arg1: i32) -> (i32, i32, i32) {
    %c0_i32 = arith.constant 0 : i32
    %c0_i32_0 = arith.constant 0 : i32
    %c0_i32_1 = arith.constant 0 : i32
    %c0_i32_2 = arith.constant 0 : i32
    return %c0_i32, %c0_i32_0, %c0_i32_1 : i32, i32, i32
  }
  func.func @transform_2(%arg0: i32, %arg1: i32) -> (i32, i32) {
    %c0_i32 = arith.constant 0 : i32
    %c0_i32_0 = arith.constant 0 : i32
    %c0_i32_1 = arith.constant 0 : i32
    return %c0_i32, %c0_i32_0 : i32, i32
  }
  func.func @transform_3(%arg0: i32, %arg1: i32) -> (i32, i32) {
    %c0_i32 = arith.constant 0 : i32
    %c0_i32_0 = arith.constant 0 : i32
    %c0_i32_1 = arith.constant 0 : i32
    return %c0_i32, %c0_i32_0 : i32, i32
  }
  func.func @transform_4(%arg0: i32, %arg1: i32) -> (i32, i32) {
    %c0_i32 = arith.constant 0 : i32
    %c0_i32_0 = arith.constant 0 : i32
    %c0_i32_1 = arith.constant 0 : i32
    return %c0_i32, %c0_i32_0 : i32, i32
  }
  func.func @transform_5(%arg0: i32, %arg1: i32) -> (i32, i32) {
    %c0_i32 = arith.constant 0 : i32
    %c0_i32_0 = arith.constant 0 : i32
    %c0_i32_1 = arith.constant 0 : i32
    return %c0_i32, %c0_i32_0 : i32, i32
  }
  func.func @transform_6(%arg0: i32, %arg1: i32) -> (i32, i32) {
    %c0_i32 = arith.constant 0 : i32
    %c0_i32_0 = arith.constant 0 : i32
    %c0_i32_1 = arith.constant 0 : i32
    return %c0_i32, %c0_i32_0 : i32, i32
  }
  func.func @transform_7(%arg0: i32, %arg1: i32) -> (i32, i32) {
    %c0_i32 = arith.constant 0 : i32
    %c0_i32_0 = arith.constant 0 : i32
    %c0_i32_1 = arith.constant 0 : i32
    return %c0_i32, %c0_i32_0 : i32, i32
  }
  func.func @transform_8(%arg0: i32, %arg1: i32) -> (i32, i32) {
    %c0_i32 = arith.constant 0 : i32
    %c0_i32_0 = arith.constant 0 : i32
    %c0_i32_1 = arith.constant 0 : i32
    return %c0_i32, %c0_i32_0 : i32, i32
  }
  func.func @transform_9(%arg0: i32, %arg1: i32) -> (i32, i32, i32) {
    %c0_i32 = arith.constant 0 : i32
    %c0_i32_0 = arith.constant 0 : i32
    return %arg0, %arg1, %c0_i32 : i32, i32, i32
  }
  func.func @transform_10(%arg0: i32, %arg1: i32) -> (i32, i32, i32) {
    %c0_i32 = arith.constant 0 : i32
    %c0_i32_0 = arith.constant 0 : i32
    return %arg0, %arg1, %c0_i32 : i32, i32, i32
  }
}

</mosaic_0001>

<llo_original>
// kernel: tpu_custom_call.1
$region0: #{tpu_custom_call.1}
  #allocation0 [shape = 'u32[]', space=smem, size = 0x4, offset = 0x4, fixed_abs, tag = 'smem constant byte address 0x4 - core index']
  #allocation1 [shape = 'u32[144,128]{1,0:T(1,128)}', space=vmem, size = 0x12000, scoped, tag = 'internal scratch']
  #allocation2 [shape = 'bf16[16,128]{1,0:T(8,128)(2,1)}', space=vmem, size = 0x1000, scoped, tag = 'scratch operand']
  #allocation3 [shape = 'bf16[16,128]{1,0:T(8,128)(2,1)}', space=vmem, size = 0x1000, scoped, tag = 'scratch operand']
  %s0 = inlined_call_operand.hbm [shape: bf16[2,16,128], index: 0, kind: input, shape index: {}]
  %s1 = inlined_call_operand.hbm [shape: bf16[1,16,128], index: 1, kind: input, shape index: {}]
  %s2 = inlined_call_operand.hbm [shape: bf16[128,128], index: 2, kind: input, shape index: {}]
  %s3 = inlined_call_operand.hbm [shape: bf16[128,128], index: 3, kind: input, shape index: {}]
  %s4 = inlined_call_operand.hbm [shape: bf16[128,128], index: 4, kind: input, shape index: {}]
  %s5 = inlined_call_operand.hbm [shape: bf16[128,128], index: 5, kind: input, shape index: {}]
  %s6 = inlined_call_operand.hbm [shape: bf16[128,128], index: 6, kind: input, shape index: {}]
  %s7 = inlined_call_operand.hbm [shape: bf16[128,128], index: 7, kind: input, shape index: {}]
  %s8 = inlined_call_operand.vmem [shape: f32[8,128], index: 8, kind: input, shape index: {}]
  %s9 = inlined_call_operand.hbm [shape: f32[2,16,128], index: 9, kind: output, shape index: {0}]
  %s10 = inlined_call_operand.hbm [shape: bf16[2,16,16], index: 10, kind: output, shape index: {1}]
  %11 = xla_tuple %s9, %s10
  %s12 = sld [smem:[#allocation0]]
  $region113: #{tpu_custom_call.1} parent=0
    _
  %s14 = ssub.s32 1, %s12
  %s15 = scalar_select 0, %s14, %s12
  $region1: #{tpu_custom_call.1} parent=0
    #allocation4 [shape = 'u8[8192]{0}', space=vmem, size = 0x2000, scoped, tag = 'input window, operand 0']
    #allocation5 [shape = 's32[2]{0}', space=sflag, size = 0x8, scoped, tag = 'scoped memory for tpu_custom_call.1']
    #allocation6 [shape = 's32[2]{0}', space=sflag, size = 0x8, scoped, tag = 'scoped memory for tpu_custom_call.1']
    #allocation7 [shape = 'u8[4096]{0}', space=vmem, size = 0x1000, scoped, tag = 'input window, operand 1, single buffered']
    #allocation8 [shape = 's32[1]{0}', space=sflag, size = 0x4, scoped, tag = 'scoped memory for tpu_custom_call.1']
    #allocation9 [shape = 'u8[32768]{0}', space=vmem, size = 0x8000, scoped, tag = 'input window, operand 2, single buffered']
    #allocation10 [shape = 'u8[32768]{0}', space=vmem, size = 0x8000, scoped, tag = 'input window, operand 3, single buffered']
    #allocation11 [shape = 's32[1]{0}', space=sflag, size = 0x4, scoped, tag = 'scoped memory for tpu_custom_call.1']
    #allocation12 [shape = 'u8[32768]{0}', space=vmem, size = 0x8000, scoped, tag = 'input window, operand 4, single buffered']
    #allocation13 [shape = 'u8[32768]{0}', space=vmem, size = 0x8000, scoped, tag = 'input window, operand 5, single buffered']
    #allocation14 [shape = 's32[1]{0}', space=sflag, size = 0x4, scoped, tag = 'scoped memory for tpu_custom_call.1']
    #allocation15 [shape = 'u8[32768]{0}', space=vmem, size = 0x8000, scoped, tag = 'input window, operand 6, single buffered']
    #allocation16 [shape = 'u8[32768]{0}', space=vmem, size = 0x8000, scoped, tag = 'input window, operand 7, single buffered']
    #allocation17 [shape = 's32[1]{0}', space=sflag, size = 0x4, scoped, tag = 'scoped memory for tpu_custom_call.1']
    #allocation18 [shape = 'u8[16384]{0}', space=vmem, size = 0x4000, scoped, tag = 'output window, operand 0']
    #allocation19 [shape = 'u8[8192]{0}', space=vmem, size = 0x2000, scoped, tag = 'output window, operand 1']
    #allocation20 [shape = 's32[2]{0}', space=sflag, size = 0x8, scoped, tag = 'scoped memory for tpu_custom_call.1']
    %16 = vsyncpa [#allocation5], 0
    %s17 = scalar_lea.sflag [#allocation5], 1
    %18 = vsyncpa %s17, 0
    %19 = vsyncpa [#allocation8], 0
    %20 = vsyncpa [#allocation11], 0
    %21 = vsyncpa [#allocation14], 0
    %22 = vsyncpa [#allocation17], 0
    %23 = vsyncpa [#allocation6], 0
    %s24 = scalar_lea.sflag [#allocation6], 1
    %25 = vsyncpa %s24, 0
    %26 = vsyncpa [#allocation20], 0
    %s27 = scalar_lea.sflag [#allocation20], 1
    %28 = vsyncpa %s27, 0
    loop: start=0, step=1, limit=4
    $region2: #{tpu_custom_call.1} parent=1 // loop_pre_header
      _
    $region3: #{tpu_custom_call.1} parent=1 // loop_header
      %s30 = sphi 0, %s34
      %p31 = scmp.ge.s32.totalorder %s30, 4
      %s37 = sphi 0, %s49
      %s38 = sphi 0, %s45
      %s39 = sphi 0, %s37
      %s40 = sphi 0, %s38
      %s41 = sphi 0, %s39
      %s42 = sphi 0, %s40
      %s52 = sphi 0, %s54
      %s55 = sphi 0, %s52
      %s56 = sphi 0, %s55
      %s72 = sphi 0, %s56
      %s76 = sphi 0, %s76
      %s78 = sphi 0, %s76
      %s79 = sphi 0, %s78
      %s93 = sphi 0, %s79
      %s97 = sphi 0, %s97
      %s99 = sphi 0, %s97
      %s100 = sphi 0, %s99
      %s114 = sphi 0, %s100
      %s118 = sphi 0, %s118
      %s120 = sphi 0, %s118
      %s121 = sphi 0, %s120
      %s135 = sphi 0, %s121
      %s139 = sphi 0, %s139
      %s141 = sphi 0, %s139
      %s142 = sphi 0, %s141
      %s156 = sphi 0, %s142
      %s160 = sphi 0, %s160
      %s162 = sphi 0, %s160
      %s163 = sphi 0, %s162
      %s177 = sphi 0, %s163
      %s181 = sphi 0, %s181
      %s183 = sphi 0, %s181
      %s184 = sphi 0, %s183
      %s198 = sphi 0, %s184
      %s202 = sphi 0, %s202
      %s204 = sphi 0, %s202
      %s205 = sphi 0, %s204
      %s219 = sphi 0, %s205
      %s223 = sphi 0, %s223
      %s225 = sphi 0, %s223
      %s226 = sphi 0, %s225
      %s240 = sphi 0, %s226
      %s248 = sphi 0, %s250
      %s251 = sphi 0, %s248
      %s252 = sphi 0, %s251
      %s268 = sphi 0, %s252
      %s276 = sphi 0, %s278
      %s279 = sphi 0, %s276
      %s280 = sphi 0, %s279
      %s296 = sphi 0, %s280
    $region4: #{tpu_custom_call.1} parent=1 // loop_header_branch
      %33 = sbr.rel (%p31) target = $region8
    $region5: #{tpu_custom_call.1} parent=1 // loop_body
      %s35 = ssub.s32 %s30, 1
      %s36 = ssub.s32 %s30, 2
      %s43 = sadd.s32 1, %s38
      %p44 = scmp.ge.s32.totalorder %s43, 1
      %s45 = scalar_select %p44, 0, %s43
      %s46 = sadd.s32 1, %s37
      %s47 = scalar_select %p44, %s46, %s37
      %p48 = scmp.ge.s32.totalorder %s47, 2
      %s49 = scalar_select %p48, 0, %s47
      %s50 = ssub.s32 %s37, %s49
      %p51 = scmp.eq.s32.totalorder %s50, 0
      %s53 = sadd.s32 %s52, 1
      %s54 = scalar_select %p51, %s52, %s53
      %p57 = pneg %p51
      %p58 = scmp.eq.s32.totalorder %s30, 1
      %p59 = por %p57, %p58
      %p60 = scmp.ne.s32.totalorder %s52, %s55
      %p61 = scmp.eq.s32.totalorder %s30, 0
      %p62 = por %p60, %p61
      %p63 = scmp.ne.s32.totalorder %s52, %s55
      %p64 = scmp.eq.s32.totalorder %s35, 1
      %p65 = por %p63, %p64
      %p66 = scmp.ne.s32.totalorder %s55, %s56
      %p67 = scmp.eq.s32.totalorder %s35, 0
      %p68 = por %p66, %p67
      %p69 = scmp.ne.s32.totalorder %s55, %s56
      %p70 = scmp.eq.s32.totalorder %s36, 1
      %p71 = por %p69, %p70
      %p73 = scmp.ne.s32.totalorder %s56, %s72
      %p74 = scmp.eq.s32.totalorder %s36, 0
      %p75 = por %p73, %p74
      %s77 = sadd.s32 %s76, 1
      %p80 = scmp.eq.s32.totalorder %s30, 1
      %p81 = scmp.ne.s32.totalorder %s76, %s78
      %p82 = scmp.eq.s32.totalorder %s30, 0
      %p83 = por %p81, %p82
      %p84 = scmp.ne.s32.totalorder %s76, %s78
      %p85 = scmp.eq.s32.totalorder %s35, 1
      %p86 = por %p84, %p85
      %p87 = scmp.ne.s32.totalorder %s78, %s79
      %p88 = scmp.eq.s32.totalorder %s35, 0
      %p89 = por %p87, %p88
      %p90 = scmp.ne.s32.totalorder %s78, %s79
      %p91 = scmp.eq.s32.totalorder %s36, 1
      %p92 = por %p90, %p91
      %p94 = scmp.ne.s32.totalorder %s79, %s93
      %p95 = scmp.eq.s32.totalorder %s36, 0
      %p96 = por %p94, %p95
      %s98 = sadd.s32 %s97, 1
      %p101 = scmp.eq.s32.totalorder %s30, 1
      %p102 = scmp.ne.s32.totalorder %s97, %s99
      %p103 = scmp.eq.s32.totalorder %s30, 0
      %p104 = por %p102, %p103
      %p105 = scmp.ne.s32.totalorder %s97, %s99
      %p106 = scmp.eq.s32.totalorder %s35, 1
      %p107 = por %p105, %p106
      %p108 = scmp.ne.s32.totalorder %s99, %s100
      %p109 = scmp.eq.s32.totalorder %s35, 0
      %p110 = por %p108, %p109
      %p111 = scmp.ne.s32.totalorder %s99, %s100
      %p112 = scmp.eq.s32.totalorder %s36, 1
      %p113 = por %p111, %p112
      %p115 = scmp.ne.s32.totalorder %s100, %s114
      %p116 = scmp.eq.s32.totalorder %s36, 0
      %p117 = por %p115, %p116
      %s119 = sadd.s32 %s118, 1
      %p122 = scmp.eq.s32.totalorder %s30, 1
      %p123 = scmp.ne.s32.totalorder %s118, %s120
      %p124 = scmp.eq.s32.totalorder %s30, 0
      %p125 = por %p123, %p124
      %p126 = scmp.ne.s32.totalorder %s118, %s120
      %p127 = scmp.eq.s32.totalorder %s35, 1
      %p128 = por %p126, %p127
      %p129 = scmp.ne.s32.totalorder %s120, %s121
      %p130 = scmp.eq.s32.totalorder %s35, 0
      %p131 = por %p129, %p130
      %p132 = scmp.ne.s32.totalorder %s120, %s121
      %p133 = scmp.eq.s32.totalorder %s36, 1
      %p134 = por %p132, %p133
      %p136 = scmp.ne.s32.totalorder %s121, %s135
      %p137 = scmp.eq.s32.totalorder %s36, 0
      %p138 = por %p136, %p137
      %s140 = sadd.s32 %s139, 1
      %p143 = scmp.eq.s32.totalorder %s30, 1
      %p144 = scmp.ne.s32.totalorder %s139, %s141
      %p145 = scmp.eq.s32.totalorder %s30, 0
      %p146 = por %p144, %p145
      %p147 = scmp.ne.s32.totalorder %s139, %s141
      %p148 = scmp.eq.s32.totalorder %s35, 1
      %p149 = por %p147, %p148
      %p150 = scmp.ne.s32.totalorder %s141, %s142
      %p151 = scmp.eq.s32.totalorder %s35, 0
      %p152 = por %p150, %p151
      %p153 = scmp.ne.s32.totalorder %s141, %s142
      %p154 = scmp.eq.s32.totalorder %s36, 1
      %p155 = por %p153, %p154
      %p157 = scmp.ne.s32.totalorder %s142, %s156
      %p158 = scmp.eq.s32.totalorder %s36, 0
      %p159 = por %p157, %p158
      %s161 = sadd.s32 %s160, 1
      %p164 = scmp.eq.s32.totalorder %s30, 1
      %p165 = scmp.ne.s32.totalorder %s160, %s162
      %p166 = scmp.eq.s32.totalorder %s30, 0
      %p167 = por %p165, %p166
      %p168 = scmp.ne.s32.totalorder %s160, %s162
      %p169 = scmp.eq.s32.totalorder %s35, 1
      %p170 = por %p168, %p169
      %p171 = scmp.ne.s32.totalorder %s162, %s163
      %p172 = scmp.eq.s32.totalorder %s35, 0
      %p173 = por %p171, %p172
      %p174 = scmp.ne.s32.totalorder %s162, %s163
      %p175 = scmp.eq.s32.totalorder %s36, 1
      %p176 = por %p174, %p175
      %p178 = scmp.ne.s32.totalorder %s163, %s177
      %p179 = scmp.eq.s32.totalorder %s36, 0
      %p180 = por %p178, %p179
      %s182 = sadd.s32 %s181, 1
      %p185 = scmp.eq.s32.totalorder %s30, 1
      %p186 = scmp.ne.s32.totalorder %s181, %s183
      %p187 = scmp.eq.s32.totalorder %s30, 0
      %p188 = por %p186, %p187
      %p189 = scmp.ne.s32.totalorder %s181, %s183
      %p190 = scmp.eq.s32.totalorder %s35, 1
      %p191 = por %p189, %p190
      %p192 = scmp.ne.s32.totalorder %s183, %s184
      %p193 = scmp.eq.s32.totalorder %s35, 0
      %p194 = por %p192, %p193
      %p195 = scmp.ne.s32.totalorder %s183, %s184
      %p196 = scmp.eq.s32.totalorder %s36, 1
      %p197 = por %p195, %p196
      %p199 = scmp.ne.s32.totalorder %s184, %s198
      %p200 = scmp.eq.s32.totalorder %s36, 0
      %p201 = por %p199, %p200
      %s203 = sadd.s32 %s202, 1
      %p206 = scmp.eq.s32.totalorder %s30, 1
      %p207 = scmp.ne.s32.totalorder %s202, %s204
      %p208 = scmp.eq.s32.totalorder %s30, 0
      %p209 = por %p207, %p208
      %p210 = scmp.ne.s32.totalorder %s202, %s204
      %p211 = scmp.eq.s32.totalorder %s35, 1
      %p212 = por %p210, %p211
      %p213 = scmp.ne.s32.totalorder %s204, %s205
      %p214 = scmp.eq.s32.totalorder %s35, 0
      %p215 = por %p213, %p214
      %p216 = scmp.ne.s32.totalorder %s204, %s205
      %p217 = scmp.eq.s32.totalorder %s36, 1
      %p218 = por %p216, %p217
      %p220 = scmp.ne.s32.totalorder %s205, %s219
      %p221 = scmp.eq.s32.totalorder %s36, 0
      %p222 = por %p220, %p221
      %s224 = sadd.s32 %s223, 1
      %p227 = scmp.eq.s32.totalorder %s30, 1
      %p228 = scmp.ne.s32.totalorder %s223, %s225
      %p229 = scmp.eq.s32.totalorder %s30, 0
      %p230 = por %p228, %p229
      %p231 = scmp.ne.s32.totalorder %s223, %s225
      %p232 = scmp.eq.s32.totalorder %s35, 1
      %p233 = por %p231, %p232
      %p234 = scmp.ne.s32.totalorder %s225, %s226
      %p235 = scmp.eq.s32.totalorder %s35, 0
      %p236 = por %p234, %p235
      %p237 = scmp.ne.s32.totalorder %s225, %s226
      %p238 = scmp.eq.s32.totalorder %s36, 1
      %p239 = por %p237, %p238
      %p241 = scmp.ne.s32.totalorder %s226, %s240
      %p242 = scmp.eq.s32.totalorder %s36, 0
      %p243 = por %p241, %p242
      %s244 = ssub.s32 %s37, %s49
      %s245 = ssub.s32 %s38, %s45
      %s246 = sor.u32 %s244, %s245
      %p247 = scmp.eq.s32.totalorder %s246, 0
      %s249 = sadd.s32 %s248, 1
      %s250 = scalar_select %p247, %s248, %s249
      %p253 = pneg %p247
      %p254 = scmp.eq.s32.totalorder %s30, 1
      %p255 = por %p253, %p254
      %p256 = scmp.ne.s32.totalorder %s248, %s251
      %p257 = scmp.eq.s32.totalorder %s30, 0
      %p258 = por %p256, %p257
      %p259 = scmp.ne.s32.totalorder %s248, %s251
      %p260 = scmp.eq.s32.totalorder %s35, 1
      %p261 = por %p259, %p260
      %p262 = scmp.ne.s32.totalorder %s251, %s252
      %p263 = scmp.eq.s32.totalorder %s35, 0
      %p264 = por %p262, %p263
      %p265 = scmp.ne.s32.totalorder %s251, %s252
      %p266 = scmp.eq.s32.totalorder %s36, 1
      %p267 = por %p265, %p266
      %p269 = scmp.ne.s32.totalorder %s252, %s268
      %p270 = scmp.eq.s32.totalorder %s36, 0
      %p271 = por %p269, %p270
      %s272 = ssub.s32 %s37, %s49
      %s273 = ssub.s32 %s38, %s45
      %s274 = sor.u32 %s272, %s273
      %p275 = scmp.eq.s32.totalorder %s274, 0
      %s277 = sadd.s32 %s276, 1
      %s278 = scalar_select %p275, %s276, %s277
      %p281 = pneg %p275
      %p282 = scmp.eq.s32.totalorder %s30, 1
      %p283 = por %p281, %p282
      %p284 = scmp.ne.s32.totalorder %s276, %s279
      %p285 = scmp.eq.s32.totalorder %s30, 0
      %p286 = por %p284, %p285
      %p287 = scmp.ne.s32.totalorder %s276, %s279
      %p288 = scmp.eq.s32.totalorder %s35, 1
      %p289 = por %p287, %p288
      %p290 = scmp.ne.s32.totalorder %s279, %s280
      %p291 = scmp.eq.s32.totalorder %s35, 0
      %p292 = por %p290, %p291
      %p293 = scmp.ne.s32.totalorder %s279, %s280
      %p294 = scmp.eq.s32.totalorder %s36, 1
      %p295 = por %p293, %p294
      %p297 = scmp.ne.s32.totalorder %s280, %s296
      %p298 = scmp.eq.s32.totalorder %s36, 0
      %p299 = por %p297, %p298
      %p300 = scmp.le.s32.totalorder 1, %s30
      %p301 = scmp.lt.s32.totalorder %s30, 3
      %p302 = pnand %p300, %p301
      %p303 = pneg %p302
      // Predicated region
      $region9: #{tpu_custom_call.1} parent=5 // pred_check
        _
      $region10: #{tpu_custom_call.1} parent=5 // pred_check_branch
        %305 = sbr.rel (%p302) target = $region12
      $region11: #{tpu_custom_call.1} parent=5 // pred_region
        %s306 = ssub.s32 %s30, 1
        // Predicated region
        $region13: #{tpu_custom_call.1} parent=11 // pred_check
          %p307 = pneg %p89
        $region14: #{tpu_custom_call.1} parent=11 // pred_check_branch
          %309 = sbr.rel (%p307) target = $region16
        $region15: #{tpu_custom_call.1} parent=11 // pred_region
          %s311 = ssub.s32 128, 128
          %312 = vsyncadd [#allocation8], %s311
          %s313 = sshll.u32 [#allocation7], 4
          %s314 = int_to_ptr.vmem [resolvable:$true] %s313
          %319 = dma.hbm_to_vmem [thread:$0]  %s1, 128, %s314, [#allocation8], 64, 64, 4
        $region16: #{tpu_custom_call.1} parent=11 // pred_fallthru
          _
        // Predicated region
        $region17: #{tpu_custom_call.1} parent=11 // pred_check
          %p320 = pneg %p110
        $region18: #{tpu_custom_call.1} parent=11 // pred_check_branch
          %322 = sbr.rel (%p320) target = $region20
        $region19: #{tpu_custom_call.1} parent=11 // pred_region
          %s324 = ssub.s32 1024, 1024
          %325 = vsyncadd [#allocation8], %s324
          %s326 = sshll.u32 [#allocation9], 4
          %s327 = int_to_ptr.vmem [resolvable:$true] %s326
          %332 = dma.hbm_to_vmem [thread:$0]  %s2, 1024, %s327, [#allocation8], 64, 64, 4
        $region20: #{tpu_custom_call.1} parent=11 // pred_fallthru
          _
        // Predicated region
        $region21: #{tpu_custom_call.1} parent=11 // pred_check
          %p333 = pneg %p131
        $region22: #{tpu_custom_call.1} parent=11 // pred_check_branch
          %335 = sbr.rel (%p333) target = $region24
        $region23: #{tpu_custom_call.1} parent=11 // pred_region
          %s337 = ssub.s32 1024, 1024
          %338 = vsyncadd [#allocation11], %s337
          %s339 = sshll.u32 [#allocation10], 4
          %s340 = int_to_ptr.vmem [resolvable:$true] %s339
          %345 = dma.hbm_to_vmem [thread:$0]  %s3, 1024, %s340, [#allocation11], 64, 64, 4
        $region24: #{tpu_custom_call.1} parent=11 // pred_fallthru
          _
        // Predicated region
        $region25: #{tpu_custom_call.1} parent=11 // pred_check
          %p346 = pneg %p152
        $region26: #{tpu_custom_call.1} parent=11 // pred_check_branch
          %348 = sbr.rel (%p346) target = $region28
        $region27: #{tpu_custom_call.1} parent=11 // pred_region
          %s350 = ssub.s32 1024, 1024
          %351 = vsyncadd [#allocation11], %s350
          %s352 = sshll.u32 [#allocation12], 4
          %s353 = int_to_ptr.vmem [resolvable:$true] %s352
          %358 = dma.hbm_to_vmem [thread:$0]  %s4, 1024, %s353, [#allocation11], 64, 64, 4
        $region28: #{tpu_custom_call.1} parent=11 // pred_fallthru
          _
        // Predicated region
        $region29: #{tpu_custom_call.1} parent=11 // pred_check
          %p359 = pneg %p173
        $region30: #{tpu_custom_call.1} parent=11 // pred_check_branch
          %361 = sbr.rel (%p359) target = $region32
        $region31: #{tpu_custom_call.1} parent=11 // pred_region
          %s363 = ssub.s32 1024, 1024
          %364 = vsyncadd [#allocation14], %s363
          %s365 = sshll.u32 [#allocation13], 4
          %s366 = int_to_ptr.vmem [resolvable:$true] %s365
          %371 = dma.hbm_to_vmem [thread:$0]  %s5, 1024, %s366, [#allocation14], 64, 64, 4
        $region32: #{tpu_custom_call.1} parent=11 // pred_fallthru
          _
        // Predicated region
        $region33: #{tpu_custom_call.1} parent=11 // pred_check
          %p372 = pneg %p194
        $region34: #{tpu_custom_call.1} parent=11 // pred_check_branch
          %374 = sbr.rel (%p372) target = $region36
        $region35: #{tpu_custom_call.1} parent=11 // pred_region
          %s376 = ssub.s32 1024, 1024
          %377 = vsyncadd [#allocation14], %s376
          %s378 = sshll.u32 [#allocation15], 4
          %s379 = int_to_ptr.vmem [resolvable:$true] %s378
          %384 = dma.hbm_to_vmem [thread:$0]  %s6, 1024, %s379, [#allocation14], 64, 64, 4
        $region36: #{tpu_custom_call.1} parent=11 // pred_fallthru
          _
        // Predicated region
        $region37: #{tpu_custom_call.1} parent=11 // pred_check
          %p385 = pneg %p215
        $region38: #{tpu_custom_call.1} parent=11 // pred_check_branch
          %387 = sbr.rel (%p385) target = $region40
        $region39: #{tpu_custom_call.1} parent=11 // pred_region
          %s389 = ssub.s32 1024, 1024
          %390 = vsyncadd [#allocation17], %s389
          %s391 = sshll.u32 [#allocation16], 4
          %s392 = int_to_ptr.vmem [resolvable:$true] %s391
          %397 = dma.hbm_to_vmem [thread:$0]  %s7, 1024, %s392, [#allocation17], 64, 64, 4
        $region40: #{tpu_custom_call.1} parent=11 // pred_fallthru
          _
        // Predicated region
        $region41: #{tpu_custom_call.1} parent=11 // pred_check
          %p398 = pneg %p236
        $region42: #{tpu_custom_call.1} parent=11 // pred_check_branch
          %400 = sbr.rel (%p398) target = $region44
        $region43: #{tpu_custom_call.1} parent=11 // pred_region
          _
        $region44: #{tpu_custom_call.1} parent=11 // pred_fallthru
          _
      $region12: #{tpu_custom_call.1} parent=5 // pred_fallthru
        _
      %p401 = scmp.lt.s32.totalorder %s30, 2
      // Predicated region
      $region45: #{tpu_custom_call.1} parent=5 // pred_check
        %p402 = pneg %p401
      $region46: #{tpu_custom_call.1} parent=5 // pred_check_branch
        %404 = sbr.rel (%p402) target = $region48
      $region47: #{tpu_custom_call.1} parent=5 // pred_region
        // Predicated region
        $region49: #{tpu_custom_call.1} parent=47 // pred_check
          %p405 = pneg %p62
        $region50: #{tpu_custom_call.1} parent=47 // pred_check_branch
          %407 = sbr.rel (%p405) target = $region52
        $region51: #{tpu_custom_call.1} parent=47 // pred_region
          %s408 = sand.u32 %s52, 1
          %s409 = scalar_lea.sflag [#allocation5], %s408
          %s410 = sand.u32 %s52, 1
          %s411 = smul.addr %s410, 8
          %s412 = scalar_lea.vmem [#allocation4], %s411
          %s414 = ssub.s32 128, 128
          %415 = vsyncadd %s409, %s414
          %s416 = smul.addr %s37, 2
          %s417 = smul.addr %s416, 64
          %s418 = scalar_lea.hbm %s0, %s417
          %s419 = sshll.u32 %s412, 4
          %s420 = int_to_ptr.vmem [resolvable:$true] %s419
          %425 = dma.hbm_to_vmem [thread:$0]  %s418, 128, %s420, %s409, 64, 64, 4
        $region52: #{tpu_custom_call.1} parent=47 // pred_fallthru
          _
      $region48: #{tpu_custom_call.1} parent=5 // pred_fallthru
        _
      %p426 = scmp.le.s32.totalorder 1, %s30
      %p427 = scmp.lt.s32.totalorder %s30, 3
      %p428 = pnand %p426, %p427
      %p429 = pneg %p428
      // Predicated region
      $region53: #{tpu_custom_call.1} parent=5 // pred_check
        _
      $region54: #{tpu_custom_call.1} parent=5 // pred_check_branch
        %431 = sbr.rel (%p428) target = $region56
      $region55: #{tpu_custom_call.1} parent=5 // pred_region
        %s432 = ssub.s32 %s30, 1
        %s433 = sand.u32 %s55, 1
        %s434 = scalar_lea.sflag [#allocation5], %s433
        %s435 = sand.u32 %s55, 1
        %s436 = smul.addr %s435, 8
        %s437 = scalar_lea.vmem [#allocation4], %s436
        // Predicated region
        $region57: #{tpu_custom_call.1} parent=55 // pred_check
          %p438 = pneg %p68
        $region58: #{tpu_custom_call.1} parent=55 // pred_check_branch
          %440 = sbr.rel (%p438) target = $region60
        $region59: #{tpu_custom_call.1} parent=55 // pred_region
          %441 = dma.done %s434, 128
        $region60: #{tpu_custom_call.1} parent=55 // pred_fallthru
          _
        // Predicated region
        $region61: #{tpu_custom_call.1} parent=55 // pred_check
          %p442 = pneg %p89
        $region62: #{tpu_custom_call.1} parent=55 // pred_check_branch
          %444 = sbr.rel (%p442) target = $region64
        $region63: #{tpu_custom_call.1} parent=55 // pred_region
          %445 = dma.done [#allocation8], 128
        $region64: #{tpu_custom_call.1} parent=55 // pred_fallthru
          _
        // Predicated region
        $region65: #{tpu_custom_call.1} parent=55 // pred_check
          %p446 = pneg %p110
        $region66: #{tpu_custom_call.1} parent=55 // pred_check_branch
          %448 = sbr.rel (%p446) target = $region68
        $region67: #{tpu_custom_call.1} parent=55 // pred_region
          %449 = dma.done [#allocation8], 1024
        $region68: #{tpu_custom_call.1} parent=55 // pred_fallthru
          _
        // Predicated region
        $region69: #{tpu_custom_call.1} parent=55 // pred_check
          %p450 = pneg %p131
        $region70: #{tpu_custom_call.1} parent=55 // pred_check_branch
          %452 = sbr.rel (%p450) target = $region72
        $region71: #{tpu_custom_call.1} parent=55 // pred_region
          %453 = dma.done [#allocation11], 1024
        $region72: #{tpu_custom_call.1} parent=55 // pred_fallthru
          _
        // Predicated region
        $region73: #{tpu_custom_call.1} parent=55 // pred_check
          %p454 = pneg %p152
        $region74: #{tpu_custom_call.1} parent=55 // pred_check_branch
          %456 = sbr.rel (%p454) target = $region76
        $region75: #{tpu_custom_call.1} parent=55 // pred_region
          %457 = dma.done [#allocation11], 1024
        $region76: #{tpu_custom_call.1} parent=55 // pred_fallthru
          _
        // Predicated region
        $region77: #{tpu_custom_call.1} parent=55 // pred_check
          %p458 = pneg %p173
        $region78: #{tpu_custom_call.1} parent=55 // pred_check_branch
          %460 = sbr.rel (%p458) target = $region80
        $region79: #{tpu_custom_call.1} parent=55 // pred_region
          %461 = dma.done [#allocation14], 1024
        $region80: #{tpu_custom_call.1} parent=55 // pred_fallthru
          _
        // Predicated region
        $region81: #{tpu_custom_call.1} parent=55 // pred_check
          %p462 = pneg %p194
        $region82: #{tpu_custom_call.1} parent=55 // pred_check_branch
          %464 = sbr.rel (%p462) target = $region84
        $region83: #{tpu_custom_call.1} parent=55 // pred_region
          %465 = dma.done [#allocation14], 1024
        $region84: #{tpu_custom_call.1} parent=55 // pred_fallthru
          _
        // Predicated region
        $region85: #{tpu_custom_call.1} parent=55 // pred_check
          %p466 = pneg %p215
        $region86: #{tpu_custom_call.1} parent=55 // pred_check_branch
          %468 = sbr.rel (%p466) target = $region88
        $region87: #{tpu_custom_call.1} parent=55 // pred_region
          %469 = dma.done [#allocation17], 1024
        $region88: #{tpu_custom_call.1} parent=55 // pred_fallthru
          _
        %s470 = sand.u32 %s55, 1
        %s471 = scalar_lea.sflag [#allocation5], %s470
        %s472 = sand.u32 %s55, 1
        %s473 = smul.addr %s472, 8
        %s474 = scalar_lea.vmem [#allocation4], %s473
        %p475 = pneg %p68
        %p476 = pneg %p65
        %p477 = pneg %p89
        %p478 = pneg %p86
        %p479 = pneg %p110
        %p480 = pneg %p107
        %p481 = pneg %p131
        %p482 = pneg %p128
        %p483 = pneg %p152
        %p484 = pneg %p149
        %p485 = pneg %p173
        %p486 = pneg %p170
        %p487 = pneg %p194
        %p488 = pneg %p191
        %p489 = pneg %p215
        %p490 = pneg %p212
        %p491 = pneg %p236
        %p492 = pneg %p233
        %p493 = pneg %p264
        %p494 = pneg %p261
        %s495 = sand.u32 %s251, 1
        %s496 = scalar_lea.sflag [#allocation6], %s495
        %s497 = sand.u32 %s251, 1
        %s498 = smul.addr %s497, 16
        %s499 = scalar_lea.vmem [#allocation18], %s498
        %p500 = pneg %p292
        %p501 = pneg %p289
        %s502 = sand.u32 %s279, 1
        %s503 = scalar_lea.sflag [#allocation20], %s502
        %s504 = sand.u32 %s279, 1
        %s505 = smul.addr %s504, 8
        %s506 = scalar_lea.vmem [#allocation19], %s505
        %s507 = smul.u32 2, %s40
        %s508 = smul.u32 2, %s40
        %p510 = scmp.eq.s32.totalorder %s40, 0
        // Predicated region
        $region89: #{tpu_custom_call.1} parent=55 // pred_check
          %p511 = pneg %p510
        $region90: #{tpu_custom_call.1} parent=55 // pred_check_branch
          %513 = sbr.rel (%p511) target = $region92
        $region91: #{tpu_custom_call.1} parent=55 // pred_region
          %v514 = vld [vmem:[%s437] sm:$0xf]
          %v515 = vld [vmem:[%s437 + $0x4] sm:$0xf]
          %v516 = vunpack.c.l.bf16 %v514
          %v517 = vunpack.c.l.bf16 %v515
          %v518 = vld [vmem:[#allocation7] sm:$0xf]
          %v519 = vld [vmem:[#allocation7 + $0x4] sm:$0xf]
          %v520 = vunpack.c.l.bf16 %v518
          %v521 = vunpack.c.l.bf16 %v519
          %v522 = vadd.f32 %v516, %v520
          %v523 = vadd.f32 %v517, %v521
          %v524 = vpack.c.bf16 %v523, %v522
          %v525 = vld [vmem:[#allocation10] sm:$0xf]
          %v526 = vld [vmem:[#allocation10 + $0x4] sm:$0xf]
          %v527 = vld [vmem:[#allocation10 + $0x8] sm:$0xf]
          %v528 = vld [vmem:[#allocation10 + $0xc] sm:$0xf]
          %v529 = vld [vmem:[#allocation10 + $0x10] sm:$0xf]
          %v530 = vld [vmem:[#allocation10 + $0x14] sm:$0xf]
          %v531 = vld [vmem:[#allocation10 + $0x18] sm:$0xf]
          %v532 = vld [vmem:[#allocation10 + $0x1c] sm:$0xf]
          %v533 = vld [vmem:[#allocation10 + $0x20] sm:$0xf]
          %v534 = vld [vmem:[#allocation10 + $0x24] sm:$0xf]
          %v535 = vld [vmem:[#allocation10 + $0x28] sm:$0xf]
          %v536 = vld [vmem:[#allocation10 + $0x2c] sm:$0xf]
          %v537 = vld [vmem:[#allocation10 + $0x30] sm:$0xf]
          %v538 = vld [vmem:[#allocation10 + $0x34] sm:$0xf]
          %v539 = vld [vmem:[#allocation10 + $0x38] sm:$0xf]
          %v540 = vld [vmem:[#allocation10 + $0x3c] sm:$0xf]
          %v557 = vunpack.c.l.b16 %v525
          %v558 = vunpack.c.l.b16 %v526
          %v559 = vunpack.c.l.b16 %v527
          %v560 = vunpack.c.l.b16 %v528
          %v561 = vunpack.c.l.b16 %v529
          %v562 = vunpack.c.l.b16 %v530
          %v563 = vunpack.c.l.b16 %v531
          %v564 = vunpack.c.l.b16 %v532
          %v565 = vunpack.c.l.b16 %v533
          %v566 = vunpack.c.l.b16 %v534
          %v567 = vunpack.c.l.b16 %v535
          %v568 = vunpack.c.l.b16 %v536
          %v569 = vunpack.c.l.b16 %v537
          %v570 = vunpack.c.l.b16 %v538
          %v571 = vunpack.c.l.b16 %v539
          %v572 = vunpack.c.l.b16 %v540
          %v573 = vpack.c.b16 %v558, %v557
          %v574 = vpack.c.b16 %v560, %v559
          %v575 = vpack.c.b16 %v562, %v561
          %v576 = vpack.c.b16 %v564, %v563
          %v577 = vpack.c.b16 %v566, %v565
          %v578 = vpack.c.b16 %v568, %v567
          %v579 = vpack.c.b16 %v570, %v569
          %v580 = vpack.c.b16 %v572, %v571
          %589 = vmatprep.subr.bf16.mxu0 0
          %590 = vmatpush1.bf16.msra.mxu0 %v580
          %591 = vmatprep.subr.bf16.mxu0 0
          %592 = vmatpush1.bf16.msra.mxu0 %v579
          %593 = vmatprep.subr.bf16.mxu0 0
          %594 = vmatpush1.bf16.msra.mxu0 %v578
          %595 = vmatprep.subr.bf16.mxu0 0
          %596 = vmatpush1.bf16.msra.mxu0 %v577
          %597 = vmatprep.subr.bf16.mxu0 0
          %598 = vmatpush1.bf16.msra.mxu0 %v576
          %599 = vmatprep.subr.bf16.mxu0 0
          %600 = vmatpush1.bf16.msra.mxu0 %v575
          %601 = vmatprep.subr.bf16.mxu0 0
          %602 = vmatpush1.bf16.msra.mxu0 %v574
          %603 = vmatprep.subr.bf16.mxu0 0
          %604 = vmatpush1.bf16.msra.mxu0 %v573
          %605 = vmatprep.subr.bf16.mxu0 0
          %606 = vmatpush2.bf16.msra.mxu0 0
          %607 = vmatprep.subr.bf16.mxu0 0
          %608 = vmatpush2.bf16.msra.mxu0 0
          %609 = vmatprep.subr.bf16.mxu0 0
          %610 = vmatpush2.bf16.msra.mxu0 0
          %611 = vmatprep.subr.bf16.mxu0 0
          %612 = vmatpush2.bf16.msra.mxu0 0
          %613 = vmatprep.subr.bf16.mxu0 0
          %614 = vmatpush2.bf16.msra.mxu0 0
          %615 = vmatprep.subr.bf16.mxu0 0
          %616 = vmatpush2.bf16.msra.mxu0 0
          %617 = vmatprep.subr.bf16.mxu0 0
          %618 = vmatpush2.bf16.msra.mxu0 0
          %619 = vmatprep.subr.bf16.mxu0 0
          %620 = vmatpush2.bf16.msra.mxu0 0
          %621 = vmatprep.mubr.bf16.mxu0 0
          %622 = vmatmul.mubr.bf16.gmra.mxu0 %v524
          %v623 = vpop.f32.mrf.mxu0
          %v624 = vadd.f32 0.0, %v623
          %v625 = vpop.f32.mrf.mxu0
          %v626 = vpop.f32.mrf.mxu0
          %v627 = vadd.f32 0.0, %v626
          %v628 = vpop.f32.mrf.mxu0
          %629 = vdwg.mxu0
          %v630 = vpack.c.bf16 %v627, %v624
          %v632 = vunpack.c.l.b16 %v630
          %v633 = vunpack.c.h.b16 %v630
          %v634 = vpack.c.b16 %v632, %v632
          %v635 = vpack.c.b16 %v633, %v633
          %638 = vst [vmem:[#allocation2] sm:$0xf] %v634
          %639 = vst [vmem:[#allocation2 + $0x4] sm:$0xf] %v635
          %v640 = vld [vmem:[#allocation12] sm:$0xf]
          %v641 = vld [vmem:[#allocation12 + $0x4] sm:$0xf]
          %v642 = vld [vmem:[#allocation12 + $0x8] sm:$0xf]
          %v643 = vld [vmem:[#allocation12 + $0xc] sm:$0xf]
          %v644 = vld [vmem:[#allocation12 + $0x10] sm:$0xf]
          %v645 = vld [vmem:[#allocation12 + $0x14] sm:$0xf]
          %v646 = vld [vmem:[#allocation12 + $0x18] sm:$0xf]
          %v647 = vld [vmem:[#allocation12 + $0x1c] sm:$0xf]
          %v648 = vld [vmem:[#allocation12 + $0x20] sm:$0xf]
          %v649 = vld [vmem:[#allocation12 + $0x24] sm:$0xf]
          %v650 = vld [vmem:[#allocation12 + $0x28] sm:$0xf]
          %v651 = vld [vmem:[#allocation12 + $0x2c] sm:$0xf]
          %v652 = vld [vmem:[#allocation12 + $0x30] sm:$0xf]
          %v653 = vld [vmem:[#allocation12 + $0x34] sm:$0xf]
          %v654 = vld [vmem:[#allocation12 + $0x38] sm:$0xf]
          %v655 = vld [vmem:[#allocation12 + $0x3c] sm:$0xf]
          %v672 = vunpack.c.l.b16 %v640
          %v673 = vunpack.c.l.b16 %v641
          %v674 = vunpack.c.l.b16 %v642
          %v675 = vunpack.c.l.b16 %v643
          %v676 = vunpack.c.l.b16 %v644
          %v677 = vunpack.c.l.b16 %v645
          %v678 = vunpack.c.l.b16 %v646
          %v679 = vunpack.c.l.b16 %v647
          %v680 = vunpack.c.l.b16 %v648
          %v681 = vunpack.c.l.b16 %v649
          %v682 = vunpack.c.l.b16 %v650
          %v683 = vunpack.c.l.b16 %v651
          %v684 = vunpack.c.l.b16 %v652
          %v685 = vunpack.c.l.b16 %v653
          %v686 = vunpack.c.l.b16 %v654
          %v687 = vunpack.c.l.b16 %v655
          %v688 = vpack.c.b16 %v673, %v672
          %v689 = vpack.c.b16 %v675, %v674
          %v690 = vpack.c.b16 %v677, %v676
          %v691 = vpack.c.b16 %v679, %v678
          %v692 = vpack.c.b16 %v681, %v680
          %v693 = vpack.c.b16 %v683, %v682
          %v694 = vpack.c.b16 %v685, %v684
          %v695 = vpack.c.b16 %v687, %v686
          %704 = vmatprep.subr.bf16.mxu0 0
          %705 = vmatpush1.bf16.msra.mxu0 %v695
          %706 = vmatprep.subr.bf16.mxu0 0
          %707 = vmatpush1.bf16.msra.mxu0 %v694
          %708 = vmatprep.subr.bf16.mxu0 0
          %709 = vmatpush1.bf16.msra.mxu0 %v693
          %710 = vmatprep.subr.bf16.mxu0 0
          %711 = vmatpush1.bf16.msra.mxu0 %v692
          %712 = vmatprep.subr.bf16.mxu0 0
          %713 = vmatpush1.bf16.msra.mxu0 %v691
          %714 = vmatprep.subr.bf16.mxu0 0
          %715 = vmatpush1.bf16.msra.mxu0 %v690
          %716 = vmatprep.subr.bf16.mxu0 0
          %717 = vmatpush1.bf16.msra.mxu0 %v689
          %718 = vmatprep.subr.bf16.mxu0 0
          %719 = vmatpush1.bf16.msra.mxu0 %v688
          %720 = vmatprep.subr.bf16.mxu0 0
          %721 = vmatpush2.bf16.msra.mxu0 0
          %722 = vmatprep.subr.bf16.mxu0 0
          %723 = vmatpush2.bf16.msra.mxu0 0
          %724 = vmatprep.subr.bf16.mxu0 0
          %725 = vmatpush2.bf16.msra.mxu0 0
          %726 = vmatprep.subr.bf16.mxu0 0
          %727 = vmatpush2.bf16.msra.mxu0 0
          %728 = vmatprep.subr.bf16.mxu0 0
          %729 = vmatpush2.bf16.msra.mxu0 0
          %730 = vmatprep.subr.bf16.mxu0 0
          %731 = vmatpush2.bf16.msra.mxu0 0
          %732 = vmatprep.subr.bf16.mxu0 0
          %733 = vmatpush2.bf16.msra.mxu0 0
          %734 = vmatprep.subr.bf16.mxu0 0
          %735 = vmatpush2.bf16.msra.mxu0 0
          %736 = vmatprep.mubr.bf16.mxu0 0
          %737 = vmatmul.mubr.bf16.gmra.mxu0 %v524
          %v738 = vpop.f32.mrf.mxu0
          %v739 = vadd.f32 0.0, %v738
          %v740 = vpop.f32.mrf.mxu0
          %v741 = vpop.f32.mrf.mxu0
          %v742 = vadd.f32 0.0, %v741
          %v743 = vpop.f32.mrf.mxu0
          %744 = vdwg.mxu0
          %v745 = vpack.c.bf16 %v742, %v739
          %v747 = vunpack.c.l.b16 %v745
          %v748 = vunpack.c.h.b16 %v745
          %v749 = vpack.c.b16 %v747, %v747
          %v750 = vpack.c.b16 %v748, %v748
          %753 = vst [vmem:[#allocation3] sm:$0xf] %v749
          %754 = vst [vmem:[#allocation3 + $0x4] sm:$0xf] %v750
        $region92: #{tpu_custom_call.1} parent=55 // pred_fallthru
          _
        %s755 = smul.u32 %s40, 16
        %s756 = sshra.s32 %s755, 3
        %s757 = sand.u32 %s755, 7
        %s758 = smul.addr %s756, 4
        %s759 = scalar_lea.vmem %s437, %s758 [#allocation4]
        %v760 = vld [vmem:[%s759] sm:$0xf]
        %v761 = vld [vmem:[%s759 + $0x4] sm:$0xf]
        %v762 = vunpack.c.l.bf16 %v760
        %v763 = vunpack.c.l.bf16 %v761
        %s764 = smul.addr %s756, 4
        %s765 = scalar_lea.vmem [#allocation7], %s764
        %v766 = vld [vmem:[%s765] sm:$0xf]
        %v767 = vld [vmem:[%s765 + $0x4] sm:$0xf]
        %v768 = vunpack.c.l.bf16 %v766
        %v769 = vunpack.c.l.bf16 %v767
        %v770 = vadd.f32 %v762, %v768
        %v771 = vadd.f32 %v763, %v769
        %v772 = vpack.c.bf16 %v771, %v770
        %v773 = vld [vmem:[#allocation9] sm:$0xf]
        %v774 = vld [vmem:[#allocation9 + $0x4] sm:$0xf]
        %v775 = vld [vmem:[#allocation9 + $0x8] sm:$0xf]
        %v776 = vld [vmem:[#allocation9 + $0xc] sm:$0xf]
        %v777 = vld [vmem:[#allocation9 + $0x10] sm:$0xf]
        %v778 = vld [vmem:[#allocation9 + $0x14] sm:$0xf]
        %v779 = vld [vmem:[#allocation9 + $0x18] sm:$0xf]
        %v780 = vld [vmem:[#allocation9 + $0x1c] sm:$0xf]
        %v781 = vld [vmem:[#allocation9 + $0x20] sm:$0xf]
        %v782 = vld [vmem:[#allocation9 + $0x24] sm:$0xf]
        %v783 = vld [vmem:[#allocation9 + $0x28] sm:$0xf]
        %v784 = vld [vmem:[#allocation9 + $0x2c] sm:$0xf]
        %v785 = vld [vmem:[#allocation9 + $0x30] sm:$0xf]
        %v786 = vld [vmem:[#allocation9 + $0x34] sm:$0xf]
        %v787 = vld [vmem:[#allocation9 + $0x38] sm:$0xf]
        %v788 = vld [vmem:[#allocation9 + $0x3c] sm:$0xf]
        %v805 = vunpack.c.l.b16 %v773
        %v806 = vunpack.c.l.b16 %v774
        %v807 = vunpack.c.l.b16 %v775
        %v808 = vunpack.c.l.b16 %v776
        %v809 = vunpack.c.l.b16 %v777
        %v810 = vunpack.c.l.b16 %v778
        %v811 = vunpack.c.l.b16 %v779
        %v812 = vunpack.c.l.b16 %v780
        %v813 = vunpack.c.l.b16 %v781
        %v814 = vunpack.c.l.b16 %v782
        %v815 = vunpack.c.l.b16 %v783
        %v816 = vunpack.c.l.b16 %v784
        %v817 = vunpack.c.l.b16 %v785
        %v818 = vunpack.c.l.b16 %v786
        %v819 = vunpack.c.l.b16 %v787
        %v820 = vunpack.c.l.b16 %v788
        %v821 = vpack.c.b16 %v806, %v805
        %v822 = vpack.c.b16 %v808, %v807
        %v823 = vpack.c.b16 %v810, %v809
        %v824 = vpack.c.b16 %v812, %v811
        %v825 = vpack.c.b16 %v814, %v813
        %v826 = vpack.c.b16 %v816, %v815
        %v827 = vpack.c.b16 %v818, %v817
        %v828 = vpack.c.b16 %v820, %v819
        %837 = vmatprep.subr.bf16.mxu0 0
        %838 = vmatpush1.bf16.msra.mxu0 %v828
        %839 = vmatprep.subr.bf16.mxu0 0
        %840 = vmatpush1.bf16.msra.mxu0 %v827
        %841 = vmatprep.subr.bf16.mxu0 0
        %842 = vmatpush1.bf16.msra.mxu0 %v826
        %843 = vmatprep.subr.bf16.mxu0 0
        %844 = vmatpush1.bf16.msra.mxu0 %v825
        %845 = vmatprep.subr.bf16.mxu0 0
        %846 = vmatpush1.bf16.msra.mxu0 %v824
        %847 = vmatprep.subr.bf16.mxu0 0
        %848 = vmatpush1.bf16.msra.mxu0 %v823
        %849 = vmatprep.subr.bf16.mxu0 0
        %850 = vmatpush1.bf16.msra.mxu0 %v822
        %851 = vmatprep.subr.bf16.mxu0 0
        %852 = vmatpush1.bf16.msra.mxu0 %v821
        %853 = vmatprep.subr.bf16.mxu0 0
        %854 = vmatpush2.bf16.msra.mxu0 0
        %855 = vmatprep.subr.bf16.mxu0 0
        %856 = vmatpush2.bf16.msra.mxu0 0
        %857 = vmatprep.subr.bf16.mxu0 0
        %858 = vmatpush2.bf16.msra.mxu0 0
        %859 = vmatprep.subr.bf16.mxu0 0
        %860 = vmatpush2.bf16.msra.mxu0 0
        %861 = vmatprep.subr.bf16.mxu0 0
        %862 = vmatpush2.bf16.msra.mxu0 0
        %863 = vmatprep.subr.bf16.mxu0 0
        %864 = vmatpush2.bf16.msra.mxu0 0
        %865 = vmatprep.subr.bf16.mxu0 0
        %866 = vmatpush2.bf16.msra.mxu0 0
        %867 = vmatprep.subr.bf16.mxu0 0
        %868 = vmatpush2.bf16.msra.mxu0 0
        %869 = vmatprep.mubr.bf16.mxu0 0
        %870 = vmatmul.mubr.bf16.gmra.mxu0 %v772
        %v871 = vpop.f32.mrf.mxu0
        %v872 = vadd.f32 0.0, %v871
        %v873 = vpop.f32.mrf.mxu0
        %v874 = vpop.f32.mrf.mxu0
        %v875 = vadd.f32 0.0, %v874
        %v876 = vpop.f32.mrf.mxu0
        %877 = vdwg.mxu0
        %v878 = vpack.c.bf16 %v875, %v872
        %v879 = vld [vmem:[#allocation2] sm:$0xf]
        %v880 = vld [vmem:[#allocation2 + $0x4] sm:$0xf]
        %v883 = vunpack.c.l.b16 %v879
        %v884 = vunpack.c.l.b16 %v880
        %v885 = vpack.c.b16 %v884, %v883
        %887 = vmatprep.subr.bf16.mxu0 0
        %888 = vmatpush1.bf16.xpose.msra.mxu0 0
        %889 = vmatprep.subr.bf16.mxu0 0
        %890 = vmatpush1.bf16.xpose.msra.mxu0 0
        %891 = vmatprep.subr.bf16.mxu0 0
        %892 = vmatpush1.bf16.xpose.msra.mxu0 0
        %893 = vmatprep.subr.bf16.mxu0 0
        %894 = vmatpush1.bf16.xpose.msra.mxu0 0
        %895 = vmatprep.subr.bf16.mxu0 0
        %896 = vmatpush1.bf16.xpose.msra.mxu0 0
        %897 = vmatprep.subr.bf16.mxu0 0
        %898 = vmatpush1.bf16.xpose.msra.mxu0 0
        %899 = vmatprep.subr.bf16.mxu0 0
        %900 = vmatpush1.bf16.xpose.msra.mxu0 0
        %901 = vmatprep.subr.bf16.mxu0 0
        %902 = vmatpush1.bf16.xpose.msra.mxu0 %v885
        %903 = vmatprep.subr.bf16.mxu0 0
        %904 = vmatpush2.bf16.xpose.msra.mxu0 0
        %905 = vmatprep.subr.bf16.mxu0 0
        %906 = vmatpush2.bf16.xpose.msra.mxu0 0
        %907 = vmatprep.subr.bf16.mxu0 0
        %908 = vmatpush2.bf16.xpose.msra.mxu0 0
        %909 = vmatprep.subr.bf16.mxu0 0
        %910 = vmatpush2.bf16.xpose.msra.mxu0 0
        %911 = vmatprep.subr.bf16.mxu0 0
        %912 = vmatpush2.bf16.xpose.msra.mxu0 0
        %913 = vmatprep.subr.bf16.mxu0 0
        %914 = vmatpush2.bf16.xpose.msra.mxu0 0
        %915 = vmatprep.subr.bf16.mxu0 0
        %916 = vmatpush2.bf16.xpose.msra.mxu0 0
        %917 = vmatprep.subr.bf16.mxu0 0
        %918 = vmatpush2.bf16.xpose.msra.mxu0 0
        %919 = vmatprep.mubr.bf16.mxu0 0
        %920 = vmatmul.mubr.bf16.gmra.mxu0 %v878
        %v921 = vpop.f32.mrf.mxu0
        %v922 = vadd.f32 0.0, %v921
        %v923 = vpop.f32.mrf.mxu0
        %v924 = vpop.f32.mrf.mxu0
        %v925 = vadd.f32 0.0, %v924
        %v926 = vpop.f32.mrf.mxu0
        %927 = vdwg.mxu0
        %v928 = vmul.f32 %v922, 0.17677669
        %v929 = vmul.f32 %v925, 0.17677669
        %vm930 = vcmask 130048
        %v931 = vsel %vm930, %v928, -inf
        %932 = vmax.xlane.f32.xlu0 %v931
        %v933 = vpop.xlane.xlu0 %932
        %v934 = vsel %vm930, %v929, -inf
        %935 = vmax.xlane.f32.xlu0 %v934
        %v936 = vpop.xlane.xlu0 %935
        %v937 = vsub.f32 %v928, %v933
        %v938 = vsub.f32 %v929, %v936
        %v939 = vmul.f32 %v937, 1.442695
        %v940 = vpow.pop %v939
        %v941 = vmul.f32 %v938, 1.442695
        %v942 = vpow.pop %v941
        %v943 = vsel %vm930, %v940, 0.0
        %944 = vadd.xlane.f32.xlu0 %v943
        %v945 = vpop.xlane.xlu0 %944
        %v946 = vsel %vm930, %v942, 0.0
        %947 = vadd.xlane.f32.xlu0 %v946
        %v948 = vpop.xlane.xlu0 %947
        %v949 = vrcp.pop %v945
        %v950 = vrcp.pop %v948
        %v951 = vmul.f32 %v940, %v949
        %v952 = vmul.f32 %v942, %v950
        %v953 = vpack.c.bf16 %v952, %v951
        %v955 = vunpack.c.l.b16 %v953
        %v956 = vunpack.c.h.b16 %v953
        %v957 = vpack.c.b16 %v955, %v955
        %v958 = vpack.c.b16 %v956, %v956
        %vm961 = vcmask 125952
        %962 = vst.msk [vmem:[%s506] sm:$0xf] %vm961, %v957
        %963 = vst.msk [vmem:[%s506 + $0x4] sm:$0xf] %vm961, %v958
        %v964 = vld [vmem:[#allocation3] sm:$0xf]
        %v965 = vld [vmem:[#allocation3 + $0x4] sm:$0xf]
        %v968 = vunpack.c.l.b16 %v964
        %v969 = vunpack.c.l.b16 %v965
        %v970 = vpack.c.b16 %v969, %v968
        %v973 = vsel %vm930, %v953, 0
        %975 = vmatprep.subr.bf16.mxu0 0
        %976 = vmatpush1.bf16.msra.mxu0 0
        %977 = vmatprep.subr.bf16.mxu0 0
        %978 = vmatpush1.bf16.msra.mxu0 0
        %979 = vmatprep.subr.bf16.mxu0 0
        %980 = vmatpush1.bf16.msra.mxu0 0
        %981 = vmatprep.subr.bf16.mxu0 0
        %982 = vmatpush1.bf16.msra.mxu0 0
        %983 = vmatprep.subr.bf16.mxu0 0
        %984 = vmatpush1.bf16.msra.mxu0 0
        %985 = vmatprep.subr.bf16.mxu0 0
        %986 = vmatpush1.bf16.msra.mxu0 0
        %987 = vmatprep.subr.bf16.mxu0 0
        %988 = vmatpush1.bf16.msra.mxu0 0
        %989 = vmatprep.subr.bf16.mxu0 0
        %990 = vmatpush1.bf16.msra.mxu0 %v970
        %991 = vmatprep.subr.bf16.mxu0 0
        %992 = vmatpush2.bf16.msra.mxu0 0
        %993 = vmatprep.subr.bf16.mxu0 0
        %994 = vmatpush2.bf16.msra.mxu0 0
        %995 = vmatprep.subr.bf16.mxu0 0
        %996 = vmatpush2.bf16.msra.mxu0 0
        %997 = vmatprep.subr.bf16.mxu0 0
        %998 = vmatpush2.bf16.msra.mxu0 0
        %999 = vmatprep.subr.bf16.mxu0 0
        %1000 = vmatpush2.bf16.msra.mxu0 0
        %1001 = vmatprep.subr.bf16.mxu0 0
        %1002 = vmatpush2.bf16.msra.mxu0 0
        %1003 = vmatprep.subr.bf16.mxu0 0
        %1004 = vmatpush2.bf16.msra.mxu0 0
        %1005 = vmatprep.subr.bf16.mxu0 0
        %1006 = vmatpush2.bf16.msra.mxu0 0
        %1007 = vmatprep.mubr.bf16.mxu0 0
        %1008 = vmatmul.mubr.bf16.gmra.mxu0 %v973
        %v1009 = vpop.f32.mrf.mxu0
        %v1010 = vadd.f32 0.0, %v1009
        %v1011 = vpop.f32.mrf.mxu0
        %v1012 = vpop.f32.mrf.mxu0
        %v1013 = vadd.f32 0.0, %v1012
        %v1014 = vpop.f32.mrf.mxu0
        %1015 = vdwg.mxu0
        %v1016 = vpack.c.bf16 %v1013, %v1010
        %v1017 = vld [vmem:[#allocation13] sm:$0xf]
        %v1018 = vld [vmem:[#allocation13 + $0x4] sm:$0xf]
        %v1019 = vld [vmem:[#allocation13 + $0x8] sm:$0xf]
        %v1020 = vld [vmem:[#allocation13 + $0xc] sm:$0xf]
        %v1021 = vld [vmem:[#allocation13 + $0x10] sm:$0xf]
        %v1022 = vld [vmem:[#allocation13 + $0x14] sm:$0xf]
        %v1023 = vld [vmem:[#allocation13 + $0x18] sm:$0xf]
        %v1024 = vld [vmem:[#allocation13 + $0x1c] sm:$0xf]
        %v1025 = vld [vmem:[#allocation13 + $0x20] sm:$0xf]
        %v1026 = vld [vmem:[#allocation13 + $0x24] sm:$0xf]
        %v1027 = vld [vmem:[#allocation13 + $0x28] sm:$0xf]
        %v1028 = vld [vmem:[#allocation13 + $0x2c] sm:$0xf]
        %v1029 = vld [vmem:[#allocation13 + $0x30] sm:$0xf]
        %v1030 = vld [vmem:[#allocation13 + $0x34] sm:$0xf]
        %v1031 = vld [vmem:[#allocation13 + $0x38] sm:$0xf]
        %v1032 = vld [vmem:[#allocation13 + $0x3c] sm:$0xf]
        %v1049 = vunpack.c.l.b16 %v1017
        %v1050 = vunpack.c.l.b16 %v1018
        %v1051 = vunpack.c.l.b16 %v1019
        %v1052 = vunpack.c.l.b16 %v1020
        %v1053 = vunpack.c.l.b16 %v1021
        %v1054 = vunpack.c.l.b16 %v1022
        %v1055 = vunpack.c.l.b16 %v1023
        %v1056 = vunpack.c.l.b16 %v1024
        %v1057 = vunpack.c.l.b16 %v1025
        %v1058 = vunpack.c.l.b16 %v1026
        %v1059 = vunpack.c.l.b16 %v1027
        %v1060 = vunpack.c.l.b16 %v1028
        %v1061 = vunpack.c.l.b16 %v1029
        %v1062 = vunpack.c.l.b16 %v1030
        %v1063 = vunpack.c.l.b16 %v1031
        %v1064 = vunpack.c.l.b16 %v1032
        %v1065 = vpack.c.b16 %v1050, %v1049
        %v1066 = vpack.c.b16 %v1052, %v1051
        %v1067 = vpack.c.b16 %v1054, %v1053
        %v1068 = vpack.c.b16 %v1056, %v1055
        %v1069 = vpack.c.b16 %v1058, %v1057
        %v1070 = vpack.c.b16 %v1060, %v1059
        %v1071 = vpack.c.b16 %v1062, %v1061
        %v1072 = vpack.c.b16 %v1064, %v1063
        %1081 = vmatprep.subr.bf16.mxu0 0
        %1082 = vmatpush1.bf16.msra.mxu0 %v1072
        %1083 = vmatprep.subr.bf16.mxu0 0
        %1084 = vmatpush1.bf16.msra.mxu0 %v1071
        %1085 = vmatprep.subr.bf16.mxu0 0
        %1086 = vmatpush1.bf16.msra.mxu0 %v1070
        %1087 = vmatprep.subr.bf16.mxu0 0
        %1088 = vmatpush1.bf16.msra.mxu0 %v1069
        %1089 = vmatprep.subr.bf16.mxu0 0
        %1090 = vmatpush1.bf16.msra.mxu0 %v1068
        %1091 = vmatprep.subr.bf16.mxu0 0
        %1092 = vmatpush1.bf16.msra.mxu0 %v1067
        %1093 = vmatprep.subr.bf16.mxu0 0
        %1094 = vmatpush1.bf16.msra.mxu0 %v1066
        %1095 = vmatprep.subr.bf16.mxu0 0
        %1096 = vmatpush1.bf16.msra.mxu0 %v1065
        %1097 = vmatprep.subr.bf16.mxu0 0
        %1098 = vmatpush2.bf16.msra.mxu0 0
        %1099 = vmatprep.subr.bf16.mxu0 0
        %1100 = vmatpush2.bf16.msra.mxu0 0
        %1101 = vmatprep.subr.bf16.mxu0 0
        %1102 = vmatpush2.bf16.msra.mxu0 0
        %1103 = vmatprep.subr.bf16.mxu0 0
        %1104 = vmatpush2.bf16.msra.mxu0 0
        %1105 = vmatprep.subr.bf16.mxu0 0
        %1106 = vmatpush2.bf16.msra.mxu0 0
        %1107 = vmatprep.subr.bf16.mxu0 0
        %1108 = vmatpush2.bf16.msra.mxu0 0
        %1109 = vmatprep.subr.bf16.mxu0 0
        %1110 = vmatpush2.bf16.msra.mxu0 0
        %1111 = vmatprep.subr.bf16.mxu0 0
        %1112 = vmatpush2.bf16.msra.mxu0 0
        %1113 = vmatprep.mubr.bf16.mxu0 0
        %1114 = vmatmul.mubr.bf16.gmra.mxu0 %v1016
        %v1115 = vpop.f32.mrf.mxu0
        %v1116 = vadd.f32 0.0, %v1115
        %v1117 = vpop.f32.mrf.mxu0
        %v1118 = vpop.f32.mrf.mxu0
        %v1119 = vadd.f32 0.0, %v1118
        %v1120 = vpop.f32.mrf.mxu0
        %1121 = vdwg.mxu0
        %v1122 = vld [vmem:[%s8] sm:$0xff]
        %v1123 = vlaneseq
        %v1124 = vand.u32 %v1123, 127
        %vm1125 = vcmp.lt.s32.totalorder %v1124, 32
        %v1126 = vsel %vm1125, 1, 0
        %v1127 = vcvt.s32.f32 %v1126
        %v1128 = vadd.f32 %v770, %v1116
        %v1129 = vadd.f32 %v771, %v1119
        %1130 = vadd.xlane.f32.xlu0 %v1128
        %v1131 = vpop.xlane.xlu0 %1130
        %1132 = vadd.xlane.f32.xlu0 %v1129
        %v1133 = vpop.xlane.xlu0 %1132
        %v1134 = vmul.f32 %v1131, 0.03125
        %v1135 = vmul.f32 %v1133, 0.03125
        %v1136 = vsub.f32 %v1128, %v1134
        %v1137 = vsub.f32 %v1129, %v1135
        %v1138 = vmul.f32 %v1136, %v1127
        %v1139 = vmul.f32 %v1137, %v1127
        %v1140 = vmul.f32 %v1138, %v1138
        %v1141 = vmul.f32 %v1139, %v1139
        %1142 = vadd.xlane.f32.xlu0 %v1140
        %v1143 = vpop.xlane.xlu0 %1142
        %1144 = vadd.xlane.f32.xlu0 %v1141
        %v1145 = vpop.xlane.xlu0 %1144
        %v1146 = vmul.f32 %v1143, 0.03125
        %v1147 = vmul.f32 %v1145, 0.03125
        %v1148 = vadd.f32 %v1146, 1e-05
        %v1149 = vadd.f32 %v1147, 1e-05
        %v1150 = vrsqrt.pop %v1148
        %v1151 = vrsqrt.pop %v1149
        %v1152 = vmul.f32 %v1138, %v1150
        %v1153 = vmul.f32 %v1139, %v1151
        %v1154 = vlaneseq
        %v1155 = vshrl.u32 %v1154, 7
        %v1156 = vsub.s32 2, %v1155
        %v1157 = vrot.slane %v1122, %v1156
        %v1158 = vmul.f32 %v1152, %v1157
        %v1159 = vmul.f32 %v1153, %v1157
        %v1160 = vlaneseq
        %v1161 = vshrl.u32 %v1160, 7
        %v1162 = vsub.s32 3, %v1161
        %v1163 = vrot.slane %v1122, %v1162
        %v1164 = vadd.f32 %v1158, %v1163
        %v1165 = vadd.f32 %v1159, %v1163
        %v1166 = vpack.c.bf16 %v1165, %v1164
        %v1167 = vld [vmem:[#allocation15] sm:$0xf]
        %v1168 = vld [vmem:[#allocation15 + $0x4] sm:$0xf]
        %v1169 = vld [vmem:[#allocation15 + $0x8] sm:$0xf]
        %v1170 = vld [vmem:[#allocation15 + $0xc] sm:$0xf]
        %v1171 = vld [vmem:[#allocation15 + $0x10] sm:$0xf]
        %v1172 = vld [vmem:[#allocation15 + $0x14] sm:$0xf]
        %v1173 = vld [vmem:[#allocation15 + $0x18] sm:$0xf]
        %v1174 = vld [vmem:[#allocation15 + $0x1c] sm:$0xf]
        %v1175 = vld [vmem:[#allocation15 + $0x20] sm:$0xf]
        %v1176 = vld [vmem:[#allocation15 + $0x24] sm:$0xf]
        %v1177 = vld [vmem:[#allocation15 + $0x28] sm:$0xf]
        %v1178 = vld [vmem:[#allocation15 + $0x2c] sm:$0xf]
        %v1179 = vld [vmem:[#allocation15 + $0x30] sm:$0xf]
        %v1180 = vld [vmem:[#allocation15 + $0x34] sm:$0xf]
        %v1181 = vld [vmem:[#allocation15 + $0x38] sm:$0xf]
        %v1182 = vld [vmem:[#allocation15 + $0x3c] sm:$0xf]
        %v1183 = vlaneseq
        %v1184 = vshrl.u32 %v1183, 7
        %v1185 = vsub.s32 0, %v1184
        %v1186 = vrot.slane %v1122, %v1185
        %v1203 = vunpack.c.l.b16 %v1167
        %v1204 = vunpack.c.l.b16 %v1168
        %v1205 = vunpack.c.l.b16 %v1169
        %v1206 = vunpack.c.l.b16 %v1170
        %v1207 = vunpack.c.l.b16 %v1171
        %v1208 = vunpack.c.l.b16 %v1172
        %v1209 = vunpack.c.l.b16 %v1173
        %v1210 = vunpack.c.l.b16 %v1174
        %v1211 = vunpack.c.l.b16 %v1175
        %v1212 = vunpack.c.l.b16 %v1176
        %v1213 = vunpack.c.l.b16 %v1177
        %v1214 = vunpack.c.l.b16 %v1178
        %v1215 = vunpack.c.l.b16 %v1179
        %v1216 = vunpack.c.l.b16 %v1180
        %v1217 = vunpack.c.l.b16 %v1181
        %v1218 = vunpack.c.l.b16 %v1182
        %v1219 = vpack.c.b16 %v1204, %v1203
        %v1220 = vpack.c.b16 %v1206, %v1205
        %v1221 = vpack.c.b16 %v1208, %v1207
        %v1222 = vpack.c.b16 %v1210, %v1209
        %v1223 = vpack.c.b16 %v1212, %v1211
        %v1224 = vpack.c.b16 %v1214, %v1213
        %v1225 = vpack.c.b16 %v1216, %v1215
        %v1226 = vpack.c.b16 %v1218, %v1217
        %1235 = vmatprep.subr.bf16.mxu0 0
        %1236 = vmatpush1.bf16.msra.mxu0 %v1226
        %1237 = vmatprep.subr.bf16.mxu0 0
        %1238 = vmatpush1.bf16.msra.mxu0 %v1225
        %1239 = vmatprep.subr.bf16.mxu0 0
        %1240 = vmatpush1.bf16.msra.mxu0 %v1224
        %1241 = vmatprep.subr.bf16.mxu0 0
        %1242 = vmatpush1.bf16.msra.mxu0 %v1223
        %1243 = vmatprep.subr.bf16.mxu0 0
        %1244 = vmatpush1.bf16.msra.mxu0 %v1222
        %1245 = vmatprep.subr.bf16.mxu0 0
        %1246 = vmatpush1.bf16.msra.mxu0 %v1221
        %1247 = vmatprep.subr.bf16.mxu0 0
        %1248 = vmatpush1.bf16.msra.mxu0 %v1220
        %1249 = vmatprep.subr.bf16.mxu0 0
        %1250 = vmatpush1.bf16.msra.mxu0 %v1219
        %1251 = vmatprep.subr.bf16.mxu0 0
        %1252 = vmatpush2.bf16.msra.mxu0 0
        %1253 = vmatprep.subr.bf16.mxu0 0
        %1254 = vmatpush2.bf16.msra.mxu0 0
        %1255 = vmatprep.subr.bf16.mxu0 0
        %1256 = vmatpush2.bf16.msra.mxu0 0
        %1257 = vmatprep.subr.bf16.mxu0 0
        %1258 = vmatpush2.bf16.msra.mxu0 0
        %1259 = vmatprep.subr.bf16.mxu0 0
        %1260 = vmatpush2.bf16.msra.mxu0 0
        %1261 = vmatprep.subr.bf16.mxu0 0
        %1262 = vmatpush2.bf16.msra.mxu0 0
        %1263 = vmatprep.subr.bf16.mxu0 0
        %1264 = vmatpush2.bf16.msra.mxu0 0
        %1265 = vmatprep.subr.bf16.mxu0 0
        %1266 = vmatpush2.bf16.msra.mxu0 0
        %1267 = vmatprep.mubr.bf16.mxu0 0
        %1268 = vmatmul.mubr.bf16.gmra.mxu0 %v1166
        %v1269 = vpop.f32.mrf.mxu0
        %v1270 = vadd.f32 %v1186, %v1269
        %v1271 = vpop.f32.mrf.mxu0
        %v1272 = vpop.f32.mrf.mxu0
        %v1273 = vadd.f32 %v1186, %v1272
        %v1274 = vpop.f32.mrf.mxu0
        %1275 = vdwg.mxu0
        %v1276 = vmax.f32 %v1270, 0.0
        %v1277 = vmax.f32 %v1273, 0.0
        %v1278 = vpack.c.bf16 %v1277, %v1276
        %v1279 = vld [vmem:[#allocation16] sm:$0xf]
        %v1280 = vld [vmem:[#allocation16 + $0x4] sm:$0xf]
        %v1281 = vld [vmem:[#allocation16 + $0x8] sm:$0xf]
        %v1282 = vld [vmem:[#allocation16 + $0xc] sm:$0xf]
        %v1283 = vld [vmem:[#allocation16 + $0x10] sm:$0xf]
        %v1284 = vld [vmem:[#allocation16 + $0x14] sm:$0xf]
        %v1285 = vld [vmem:[#allocation16 + $0x18] sm:$0xf]
        %v1286 = vld [vmem:[#allocation16 + $0x1c] sm:$0xf]
        %v1287 = vld [vmem:[#allocation16 + $0x20] sm:$0xf]
        %v1288 = vld [vmem:[#allocation16 + $0x24] sm:$0xf]
        %v1289 = vld [vmem:[#allocation16 + $0x28] sm:$0xf]
        %v1290 = vld [vmem:[#allocation16 + $0x2c] sm:$0xf]
        %v1291 = vld [vmem:[#allocation16 + $0x30] sm:$0xf]
        %v1292 = vld [vmem:[#allocation16 + $0x34] sm:$0xf]
        %v1293 = vld [vmem:[#allocation16 + $0x38] sm:$0xf]
        %v1294 = vld [vmem:[#allocation16 + $0x3c] sm:$0xf]
        %v1295 = vlaneseq
        %v1296 = vshrl.u32 %v1295, 7
        %v1297 = vsub.s32 1, %v1296
        %v1298 = vrot.slane %v1122, %v1297
        %v1315 = vunpack.c.l.b16 %v1279
        %v1316 = vunpack.c.l.b16 %v1280
        %v1317 = vunpack.c.l.b16 %v1281
        %v1318 = vunpack.c.l.b16 %v1282
        %v1319 = vunpack.c.l.b16 %v1283
        %v1320 = vunpack.c.l.b16 %v1284
        %v1321 = vunpack.c.l.b16 %v1285
        %v1322 = vunpack.c.l.b16 %v1286
        %v1323 = vunpack.c.l.b16 %v1287
        %v1324 = vunpack.c.l.b16 %v1288
        %v1325 = vunpack.c.l.b16 %v1289
        %v1326 = vunpack.c.l.b16 %v1290
        %v1327 = vunpack.c.l.b16 %v1291
        %v1328 = vunpack.c.l.b16 %v1292
        %v1329 = vunpack.c.l.b16 %v1293
        %v1330 = vunpack.c.l.b16 %v1294
        %v1331 = vpack.c.b16 %v1316, %v1315
        %v1332 = vpack.c.b16 %v1318, %v1317
        %v1333 = vpack.c.b16 %v1320, %v1319
        %v1334 = vpack.c.b16 %v1322, %v1321
        %v1335 = vpack.c.b16 %v1324, %v1323
        %v1336 = vpack.c.b16 %v1326, %v1325
        %v1337 = vpack.c.b16 %v1328, %v1327
        %v1338 = vpack.c.b16 %v1330, %v1329
        %1347 = vmatprep.subr.bf16.mxu0 0
        %1348 = vmatpush1.bf16.msra.mxu0 %v1338
        %1349 = vmatprep.subr.bf16.mxu0 0
        %1350 = vmatpush1.bf16.msra.mxu0 %v1337
        %1351 = vmatprep.subr.bf16.mxu0 0
        %1352 = vmatpush1.bf16.msra.mxu0 %v1336
        %1353 = vmatprep.subr.bf16.mxu0 0
        %1354 = vmatpush1.bf16.msra.mxu0 %v1335
        %1355 = vmatprep.subr.bf16.mxu0 0
        %1356 = vmatpush1.bf16.msra.mxu0 %v1334
        %1357 = vmatprep.subr.bf16.mxu0 0
        %1358 = vmatpush1.bf16.msra.mxu0 %v1333
        %1359 = vmatprep.subr.bf16.mxu0 0
        %1360 = vmatpush1.bf16.msra.mxu0 %v1332
        %1361 = vmatprep.subr.bf16.mxu0 0
        %1362 = vmatpush1.bf16.msra.mxu0 %v1331
        %1363 = vmatprep.subr.bf16.mxu0 0
        %1364 = vmatpush2.bf16.msra.mxu0 0
        %1365 = vmatprep.subr.bf16.mxu0 0
        %1366 = vmatpush2.bf16.msra.mxu0 0
        %1367 = vmatprep.subr.bf16.mxu0 0
        %1368 = vmatpush2.bf16.msra.mxu0 0
        %1369 = vmatprep.subr.bf16.mxu0 0
        %1370 = vmatpush2.bf16.msra.mxu0 0
        %1371 = vmatprep.subr.bf16.mxu0 0
        %1372 = vmatpush2.bf16.msra.mxu0 0
        %1373 = vmatprep.subr.bf16.mxu0 0
        %1374 = vmatpush2.bf16.msra.mxu0 0
        %1375 = vmatprep.subr.bf16.mxu0 0
        %1376 = vmatpush2.bf16.msra.mxu0 0
        %1377 = vmatprep.subr.bf16.mxu0 0
        %1378 = vmatpush2.bf16.msra.mxu0 0
        %1379 = vmatprep.mubr.bf16.mxu0 0
        %1380 = vmatmul.mubr.bf16.gmra.mxu0 %v1278
        %v1381 = vpop.f32.mrf.mxu0
        %v1382 = vadd.f32 %v1298, %v1381
        %v1383 = vpop.f32.mrf.mxu0
        %v1384 = vpop.f32.mrf.mxu0
        %v1385 = vadd.f32 %v1298, %v1384
        %v1386 = vpop.f32.mrf.mxu0
        %1387 = vdwg.mxu0
        %v1388 = vadd.f32 %v1164, %v1382
        %v1389 = vadd.f32 %v1165, %v1385
        %1390 = vadd.xlane.f32.xlu0 %v1388
        %v1391 = vpop.xlane.xlu0 %1390
        %1392 = vadd.xlane.f32.xlu0 %v1389
        %v1393 = vpop.xlane.xlu0 %1392
        %v1394 = vmul.f32 %v1391, 0.03125
        %v1395 = vmul.f32 %v1393, 0.03125
        %v1396 = vsub.f32 %v1388, %v1394
        %v1397 = vsub.f32 %v1389, %v1395
        %v1398 = vmul.f32 %v1396, %v1127
        %v1399 = vmul.f32 %v1397, %v1127
        %v1400 = vmul.f32 %v1398, %v1398
        %v1401 = vmul.f32 %v1399, %v1399
        %1402 = vadd.xlane.f32.xlu0 %v1400
        %v1403 = vpop.xlane.xlu0 %1402
        %1404 = vadd.xlane.f32.xlu0 %v1401
        %v1405 = vpop.xlane.xlu0 %1404
        %v1406 = vmul.f32 %v1403, 0.03125
        %v1407 = vmul.f32 %v1405, 0.03125
        %v1408 = vadd.f32 %v1406, 1e-05
        %v1409 = vadd.f32 %v1407, 1e-05
        %v1410 = vrsqrt.pop %v1408
        %v1411 = vrsqrt.pop %v1409
        %v1412 = vmul.f32 %v1398, %v1410
        %v1413 = vmul.f32 %v1399, %v1411
        %v1414 = vlaneseq
        %v1415 = vshrl.u32 %v1414, 7
        %v1416 = vsub.s32 4, %v1415
        %v1417 = vrot.slane %v1122, %v1416
        %v1418 = vmul.f32 %v1412, %v1417
        %v1419 = vmul.f32 %v1413, %v1417
        %v1420 = vlaneseq
        %v1421 = vshrl.u32 %v1420, 7
        %v1422 = vsub.s32 5, %v1421
        %v1423 = vrot.slane %v1122, %v1422
        %v1424 = vadd.f32 %v1418, %v1423
        %v1425 = vadd.f32 %v1419, %v1423
        %1426 = vst [vmem:[%s499] sm:$0xff] %v1424
        %1427 = vst [vmem:[%s499 + $0x8] sm:$0xff] %v1425
        %s1428 = sand.u32 %s251, 1
        %s1429 = scalar_lea.sflag [#allocation6], %s1428
        %s1430 = sand.u32 %s251, 1
        %s1431 = smul.addr %s1430, 16
        %s1432 = scalar_lea.vmem [#allocation18], %s1431
        %s1433 = sand.u32 %s279, 1
        %s1434 = scalar_lea.sflag [#allocation20], %s1433
        %s1435 = sand.u32 %s279, 1
        %s1436 = smul.addr %s1435, 8
        %s1437 = scalar_lea.vmem [#allocation19], %s1436
        // Predicated region
        $region93: #{tpu_custom_call.1} parent=55 // pred_check
          %p1438 = pneg %p261
        $region94: #{tpu_custom_call.1} parent=55 // pred_check_branch
          %1440 = sbr.rel (%p1438) target = $region96
        $region95: #{tpu_custom_call.1} parent=55 // pred_region
          %s1441 = smul.u32 2, %s40
          %s1443 = ssub.s32 256, 256
          %1444 = vsyncadd %s1429, %s1443
          %s1445 = smul.addr %s39, 2
          %s1446 = sadd.s32 %s1441, %s1445
          %s1447 = smul.addr %s1446, 128
          %s1448 = scalar_lea.hbm %s9, %s1447
          %s1449 = sshll.u32 %s1432, 4
          %s1450 = int_to_ptr.vmem [resolvable:$true] %s1449
          %1455 = dma.vmem_to_hbm [thread:$0]  %s1450, 256, %s1448, %s1429, 128, 128, 8
        $region96: #{tpu_custom_call.1} parent=55 // pred_fallthru
          _
        // Predicated region
        $region97: #{tpu_custom_call.1} parent=55 // pred_check
          %p1456 = pneg %p289
        $region98: #{tpu_custom_call.1} parent=55 // pred_check_branch
          %1458 = sbr.rel (%p1456) target = $region100
        $region99: #{tpu_custom_call.1} parent=55 // pred_region
          %s1459 = smul.u32 2, %s40
          %s1461 = ssub.s32 128, 128
          %1462 = vsyncadd %s1434, %s1461
          %s1463 = smul.addr %s39, 2
          %s1464 = sadd.s32 %s1459, %s1463
          %s1465 = smul.addr %s1464, 64
          %s1466 = scalar_lea.hbm %s10, %s1465
          %s1467 = sshll.u32 %s1437, 4
          %s1468 = int_to_ptr.vmem [resolvable:$true] %s1467
          %1473 = dma.vmem_to_hbm [thread:$0]  %s1468, 128, %s1466, %s1434, 64, 64, 4
        $region100: #{tpu_custom_call.1} parent=55 // pred_fallthru
          _
      $region56: #{tpu_custom_call.1} parent=5 // pred_fallthru
        _
      %p1474 = scmp.le.s32.totalorder 2, %s30
      // Predicated region
      $region101: #{tpu_custom_call.1} parent=5 // pred_check
        %p1475 = pneg %p1474
      $region102: #{tpu_custom_call.1} parent=5 // pred_check_branch
        %1477 = sbr.rel (%p1475) target = $region104
      $region103: #{tpu_custom_call.1} parent=5 // pred_region
        %s1478 = ssub.s32 %s30, 2
        // Predicated region
        $region105: #{tpu_custom_call.1} parent=103 // pred_check
          %p1479 = pneg %p267
        $region106: #{tpu_custom_call.1} parent=103 // pred_check_branch
          %1481 = sbr.rel (%p1479) target = $region108
        $region107: #{tpu_custom_call.1} parent=103 // pred_region
          %s1482 = sand.u32 %s252, 1
          %s1483 = scalar_lea.sflag [#allocation6], %s1482
          %s1484 = sand.u32 %s252, 1
          %s1485 = smul.addr %s1484, 16
          %s1486 = scalar_lea.vmem [#allocation18], %s1485
          %1487 = dma.done %s1483, 256
        $region108: #{tpu_custom_call.1} parent=103 // pred_fallthru
          _
        // Predicated region
        $region109: #{tpu_custom_call.1} parent=103 // pred_check
          %p1488 = pneg %p295
        $region110: #{tpu_custom_call.1} parent=103 // pred_check_branch
          %1490 = sbr.rel (%p1488) target = $region112
        $region111: #{tpu_custom_call.1} parent=103 // pred_region
          %s1491 = sand.u32 %s280, 1
          %s1492 = scalar_lea.sflag [#allocation20], %s1491
          %s1493 = sand.u32 %s280, 1
          %s1494 = smul.addr %s1493, 8
          %s1495 = scalar_lea.vmem [#allocation19], %s1494
          %1496 = dma.done %s1492, 128
        $region112: #{tpu_custom_call.1} parent=103 // pred_fallthru
          _
      $region104: #{tpu_custom_call.1} parent=5 // pred_fallthru
        _
    $region6: #{tpu_custom_call.1} parent=1 // loop_footer
      %s34 = sadd.s32 1, %s30
    $region7: #{tpu_custom_call.1} parent=1 // loop_footer_branch
      %29 = sbr.rel target = $region3
    $region8: #{tpu_custom_call.1} parent=1 // loop_exit
      _
    %1497 = vsyncpa [#allocation5], 1
    %s1498 = scalar_lea.sflag [#allocation5], 1
    %1499 = vsyncpa %s1498, 1
    %1500 = vsyncpa [#allocation8], 1
    %1501 = vsyncpa [#allocation11], 1
    %1502 = vsyncpa [#allocation14], 1
    %1503 = vsyncpa [#allocation17], 1
    %1504 = vsyncpa [#allocation6], 1
    %s1505 = scalar_lea.sflag [#allocation6], 1
    %1506 = vsyncpa %s1505, 1
    %1507 = vsyncpa [#allocation20], 1
    %s1508 = scalar_lea.sflag [#allocation20], 1
    %1509 = vsyncpa %s1508, 1

</llo_original>
